<compile_context>
chip_gen: v7x
topology: tpu7x:2x2x1
jax: 0.10.0
libtpu: 0.0.40
codegen_flags: <defaults>
</compile_context>

<pallas_src>
import functools
import math

import jax
import jax.numpy as jnp
from jax.experimental import pallas as pl
from jax.experimental.pallas import tpu as pltpu


def _erf(z):
    """Abramowitz & Stegun 7.1.26 erf approximation, |error| < 1.5e-7 (f32)."""
    a1, a2, a3, a4, a5 = (0.254829592, -0.284496736, 1.421413741,
                          -1.453152027, 1.061405429)
    p = 0.3275911
    sgn = jnp.where(z >= 0, 1.0, -1.0)
    az = jnp.abs(z)
    t = 1.0 / (1.0 + p * az)
    poly = ((((a5 * t + a4) * t + a3) * t + a2) * t + a1) * t
    return sgn * (1.0 - poly * jnp.exp(-az * az))


def encoder_stack_kernel(x_ref, vec_e_ref, bqkv_ref, bf1_ref,
                         wqkv_ref, wo_ref, wf1_ref, wf2_ref,
                         out_ref,
                         *, num_heads, eps=1e-5):
    """Grid = (batch_block, layer). Processes one encoder layer for a block of
    batch rows.  The running activation lives in out_ref (same block index for
    every layer, so it stays resident in VMEM and is written back to HBM only
    when the batch block changes / at the end)."""
    l = pl.program_id(1)

    @pl.when(l == 0)
    def _():
        out_ref[...] = x_ref[...]

    Bb, S, E = out_ref.shape
    H = num_heads
    D = E // H
    R = Bb * S
    bf16 = jnp.bfloat16
    f32 = jnp.float32

    x0 = out_ref[...].astype(f32).reshape(R, E)            # (R, E) f32

    vec_e = vec_e_ref[0]                                    # (4, E) f32
    ln_g, ln_b = vec_e[0:1], vec_e[1:2]
    bo, bf2 = vec_e[2:3], vec_e[3:4]

    # ---- LayerNorm (f32 stats, biased variance, eps=1e-5, affine) ----
    mean = jnp.mean(x0, axis=-1, keepdims=True)
    var = jnp.mean(jnp.square(x0 - mean), axis=-1, keepdims=True)
    xn = (x0 - mean) * jax.lax.rsqrt(var + eps) * ln_g + ln_b

    # ---- fused QKV projection: (R, E) x (E, 3E), bf16 operands / f32 acc ----
    qkv = jnp.dot(xn.astype(bf16), wqkv_ref[0],
                  preferred_element_type=f32) + bqkv_ref[0]             # (R, 3E)

    wo = wo_ref[0]                                          # (H, D, E) bf16
    scale = 1.0 / math.sqrt(D)

    # ---- per-batch-row attention (heads batched along a leading axis) ----
    attn_rows = []
    for b in range(Bb):                                     # static unroll
        rows = qkv[b * S:(b + 1) * S]                       # (S, 3E)
        qh = jnp.stack([rows[:, h * D:(h + 1) * D] for h in range(H)], axis=0)
        kh = jnp.stack([rows[:, E + h * D:E + (h + 1) * D] for h in range(H)], axis=0)
        vh = jnp.stack([rows[:, 2 * E + h * D:2 * E + (h + 1) * D] for h in range(H)], axis=0)

        s = jnp.einsum('hsd,htd->hst', qh.astype(bf16), kh.astype(bf16),
                       preferred_element_type=f32) * scale              # (H, S, S)
        m = jnp.max(s, axis=-1, keepdims=True)
        p = jnp.exp(s - m)
        p = p * pl.reciprocal(jnp.sum(p, axis=-1, keepdims=True), approx=True)
        ctx = jnp.einsum('hst,htd->hsd', p.astype(bf16), vh.astype(bf16),
                         preferred_element_type=f32)                    # (H, S, D)
        # fused output projection: sum over heads of lane-dense (S, E) tiles
        a_b = jnp.einsum('hsd,hde->hse', ctx.astype(bf16), wo,
                         preferred_element_type=f32).sum(axis=0)        # (S, E)
        attn_rows.append(a_b)

    attn = jnp.concatenate(attn_rows, axis=0) + bo          # (R, E)
    x1 = attn + x0                                          # residual 1

    # ---- feed forward: Linear -> GELU -> (Dropout = id) -> Linear ----
    h1 = jnp.dot(x1.astype(bf16), wf1_ref[0],
                 preferred_element_type=f32) + bf1_ref[0]               # (R, 4E)
    g = 0.5 * h1 * (1.0 + _erf(h1 * (1.0 / math.sqrt(2.0))))
    o = jnp.dot(g.astype(bf16), wf2_ref[0],
                preferred_element_type=f32) + bf2                       # (R, E)

    out_ref[...] = (o + x1).reshape(Bb, S, E).astype(out_ref.dtype)     # residual 2


def encoder_forward(x, stacked_params, num_heads, *, b_block=None):
    """Run the whole L-layer encoder in one pallas_call, grid=(B//b_block, L)."""
    B, S, E = x.shape
    vec_e, b_qkv, b_f1, w_qkv, w_o, w_f1, w_f2 = stacked_params
    L = vec_e.shape[0]
    if b_block is None:
        b_block = B            # whole batch in-kernel: weights stream once per layer
    assert B % b_block == 0

    in_specs = [pl.BlockSpec((b_block, S, E), lambda b, l: (b, 0, 0))]
    for p in (vec_e, b_qkv, b_f1, w_qkv, w_o, w_f1, w_f2):
        nd = p.ndim
        in_specs.append(
            pl.BlockSpec((1,) + p.shape[1:],
                         lambda b, l, _nd=nd: (l,) + (0,) * (_nd - 1)))

    kernel = functools.partial(encoder_stack_kernel, num_heads=num_heads)
    return pl.pallas_call(
        kernel,
        out_shape=jax.ShapeDtypeStruct((B, S, E), x.dtype),
        grid=(B // b_block, L),
        in_specs=in_specs,
        out_specs=pl.BlockSpec((b_block, S, E), lambda b, l: (b, 0, 0)),
        compiler_params=pltpu.CompilerParams(
            dimension_semantics=("parallel", "arbitrary"),
            vmem_limit_bytes=64 * 1024 * 1024),
    )(x, vec_e, b_qkv, b_f1, w_qkv, w_o, w_f1, w_f2)


def init_encoder_params(key, embed_size, num_heads, expend, num_layers):
    """Deterministic synthetic parameters in torch layout, converted to the
    kernel layout (bf16 weights, packed f32 vectors) and stacked along a leading
    layer axis."""
    E, H = embed_size, num_heads
    assert E % H == 0
    D = E // H
    F = expend * E
    sc = 0.02

    vec_e, b_qkv, b_f1, w_qkv, w_o, w_f1, w_f2 = [], [], [], [], [], [], []
    for layer in range(num_layers):
        lkey = jax.random.fold_in(key, layer)
        ks = jax.random.split(lkey, 8)
        # torch-layout tensors
        ln_g = jnp.ones((E,), jnp.float32)
        ln_b = jnp.zeros((E,), jnp.float32)
        in_proj_w = sc * jax.random.normal(ks[0], (3 * E, E), jnp.float32)   # (3E, E)
        in_proj_b = sc * jax.random.normal(ks[1], (3 * E,), jnp.float32)
        out_w = sc * jax.random.normal(ks[2], (E, E), jnp.float32)           # (out, in)
        out_b = sc * jax.random.normal(ks[3], (E,), jnp.float32)
        f1_w = sc * jax.random.normal(ks[4], (F, E), jnp.float32)
        f1_b = sc * jax.random.normal(ks[5], (F,), jnp.float32)
        f2_w = sc * jax.random.normal(ks[6], (E, F), jnp.float32)
        f2_b = sc * jax.random.normal(ks[7], (E,), jnp.float32)

        # kernel layout
        vec_e.append(jnp.stack([ln_g, ln_b, out_b, f2_b], axis=0))           # (4, E)
        b_qkv.append(in_proj_b.reshape(1, 3 * E))                            # (1, 3E)
        b_f1.append(f1_b.reshape(1, F))                                      # (1, F)
        w_qkv.append(in_proj_w.T.astype(jnp.bfloat16))                       # (E, 3E)
        w_o.append(out_w.T.reshape(H, D, E).astype(jnp.bfloat16))            # (H, D, E)
        w_f1.append(f1_w.T.astype(jnp.bfloat16))                             # (E, F)
        w_f2.append(f2_w.T.astype(jnp.bfloat16))                             # (F, E)

    stack = lambda xs: jnp.stack(xs, axis=0)
    return (stack(vec_e), stack(b_qkv), stack(b_f1),
            stack(w_qkv), stack(w_o), stack(w_f1), stack(w_f2))


if __name__ == "__main__":
    # Small, consistent shapes: batch=2, seq=8 patches, embed=32, heads=4.
    B, S, E = 2, 8, 32
    NUM_HEADS = 4
    EXPEND = 4
    NUM_LAYERS = 2

    key = jax.random.PRNGKey(0)
    xkey, pkey = jax.random.split(key)
    x = jax.random.normal(xkey, (B, S, E), dtype=jnp.float32)
    params = init_encoder_params(pkey, E, NUM_HEADS, EXPEND, NUM_LAYERS)

    out = encoder_forward(x, params, NUM_HEADS)
    out = jax.block_until_ready(out)
    assert out.shape == (B, S, E)
    assert bool(jnp.all(jnp.isfinite(out)))
    print("KERNEL_OK")
</pallas_src>

<mosaic_0001>
module attributes {stable_mosaic.version = 11 : i64} {
  func.func @encoder_stack_kernel(%arg0: i32, %arg1: i32, %arg2: memref<2x8x32xf32, #tpu.memory_space<vmem>>, %arg3: memref<1x4x32xf32, #tpu.memory_space<vmem>>, %arg4: memref<1x1x96xf32, #tpu.memory_space<vmem>>, %arg5: memref<1x1x128xf32, #tpu.memory_space<vmem>>, %arg6: memref<1x32x96xbf16, #tpu.memory_space<vmem>>, %arg7: memref<1x4x8x32xbf16, #tpu.memory_space<vmem>>, %arg8: memref<1x32x128xbf16, #tpu.memory_space<vmem>>, %arg9: memref<1x128x32xbf16, #tpu.memory_space<vmem>>, %arg10: memref<2x8x32xf32, #tpu.memory_space<vmem>>) attributes {dimension_semantics = [#tpu.dimension_semantics<parallel>, #tpu.dimension_semantics<arbitrary>], iteration_bounds = array<i64: 1, 2>, scalar_prefetch = 0 : i64, scratch_operands = 0 : i64, tpu.core_type = #tpu.core_type<tc>, window_params = [{transform_indices = @transform_0, window_bounds = array<i64: 2, 8, 32>}, {transform_indices = @transform_1, window_bounds = array<i64: 1, 4, 32>}, {transform_indices = @transform_2, window_bounds = array<i64: 1, 1, 96>}, {transform_indices = @transform_3, window_bounds = array<i64: 1, 1, 128>}, {transform_indices = @transform_4, window_bounds = array<i64: 1, 32, 96>}, {transform_indices = @transform_5, window_bounds = array<i64: 1, 4, 8, 32>}, {transform_indices = @transform_6, window_bounds = array<i64: 1, 32, 128>}, {transform_indices = @transform_7, window_bounds = array<i64: 1, 128, 32>}, {transform_indices = @transform_8, window_bounds = array<i64: 2, 8, 32>}]} {
    %c0_i32 = arith.constant 0 : i32
    %0 = arith.cmpi eq, %arg1, %c0_i32 : i32
    %1 = arith.extui %0 : i1 to i32
    %c0_i32_0 = arith.constant 0 : i32
    %2 = arith.cmpi ne, %1, %c0_i32_0 : i32
    scf.if %2 {
      %c0_65 = arith.constant 0 : index
      %c0_66 = arith.constant 0 : index
      %c0_67 = arith.constant 0 : index
      %203 = vector.load %arg2[%c0_65, %c0_66, %c0_67] : memref<2x8x32xf32, #tpu.memory_space<vmem>>, vector<2x8x32xf32>
      %c0_68 = arith.constant 0 : index
      %c0_69 = arith.constant 0 : index
      %c0_70 = arith.constant 0 : index
      %204 = vector.load %arg10[%c0_68, %c0_69, %c0_70] : memref<2x8x32xf32, #tpu.memory_space<vmem>>, vector<2x8x32xf32>
      tpu.vector_store %arg10[%c0_68, %c0_69, %c0_70], %203 {strides = array<i32>} : memref<2x8x32xf32, #tpu.memory_space<vmem>>, vector<2x8x32xf32>,
    } else {
    }
    %c0 = arith.constant 0 : index
    %c0_1 = arith.constant 0 : index
    %c0_2 = arith.constant 0 : index
    %3 = vector.load %arg10[%c0, %c0_1, %c0_2] : memref<2x8x32xf32, #tpu.memory_space<vmem>>, vector<2x8x32xf32>
    %4 = vector.shape_cast %3 : vector<2x8x32xf32> to vector<16x32xf32>
    %c0_3 = arith.constant 0 : index
    %c0_4 = arith.constant 0 : index
    %c0_5 = arith.constant 0 : index
    %5 = vector.load %arg3[%c0_3, %c0_4, %c0_5] : memref<1x4x32xf32, #tpu.memory_space<vmem>>, vector<1x4x32xf32>
    %6 = vector.shape_cast %5 : vector<1x4x32xf32> to vector<4x32xf32>
    %7 = vector.extract_strided_slice %6 {offsets = [0, 0], sizes = [1, 32], strides = [1, 1]} : vector<4x32xf32> to vector<1x32xf32>
    %8 = vector.extract_strided_slice %6 {offsets = [1, 0], sizes = [1, 32], strides = [1, 1]} : vector<4x32xf32> to vector<1x32xf32>
    %9 = vector.extract_strided_slice %6 {offsets = [2, 0], sizes = [1, 32], strides = [1, 1]} : vector<4x32xf32> to vector<1x32xf32>
    %10 = vector.extract_strided_slice %6 {offsets = [3, 0], sizes = [1, 32], strides = [1, 1]} : vector<4x32xf32> to vector<1x32xf32>
    %cst = arith.constant dense<0.000000e+00> : vector<16xf32>
    %11 = vector.multi_reduction <add>, %4, %cst [1] : vector<16x32xf32> to vector<16xf32>
    %12 = vector.shape_cast %11 : vector<16xf32> to vector<16x1xf32>
    %cst_6 = arith.constant 3.200000e+01 : f32
    %13 = vector.broadcast %cst_6 : f32 to vector<16x1xf32>
    %14 = arith.divf %12, %13 : vector<16x1xf32>
    %15 = vector.broadcast %14 : vector<16x1xf32> to vector<16x32xf32>
    %16 = arith.subf %4, %15 : vector<16x32xf32>
    %17 = arith.mulf %16, %16 : vector<16x32xf32>
    %cst_7 = arith.constant dense<0.000000e+00> : vector<16xf32>
    %18 = vector.multi_reduction <add>, %17, %cst_7 [1] : vector<16x32xf32> to vector<16xf32>
    %19 = vector.shape_cast %18 : vector<16xf32> to vector<16x1xf32>
    %cst_8 = arith.constant 3.200000e+01 : f32
    %20 = vector.broadcast %cst_8 : f32 to vector<16x1xf32>
    %21 = arith.divf %19, %20 : vector<16x1xf32>
    %22 = vector.broadcast %14 : vector<16x1xf32> to vector<16x32xf32>
    %23 = arith.subf %4, %22 : vector<16x32xf32>
    %cst_9 = arith.constant 9.99999974E-6 : f32
    %24 = vector.broadcast %cst_9 : f32 to vector<16x1xf32>
    %25 = arith.addf %21, %24 : vector<16x1xf32>
    %26 = math.rsqrt %25 : vector<16x1xf32>
    %27 = vector.broadcast %26 : vector<16x1xf32> to vector<16x32xf32>
    %28 = arith.mulf %23, %27 : vector<16x32xf32>
    %29 = vector.broadcast %7 : vector<1x32xf32> to vector<16x32xf32>
    %30 = arith.mulf %28, %29 : vector<16x32xf32>
    %31 = vector.broadcast %8 : vector<1x32xf32> to vector<16x32xf32>
    %32 = arith.addf %30, %31 : vector<16x32xf32>
    %33 = arith.truncf %32 : vector<16x32xf32> to vector<16x32xbf16>
    %c0_10 = arith.constant 0 : index
    %c0_11 = arith.constant 0 : index
    %c0_12 = arith.constant 0 : index
    %34 = vector.load %arg6[%c0_10, %c0_11, %c0_12] : memref<1x32x96xbf16, #tpu.memory_space<vmem>>, vector<1x32x96xbf16>
    %35 = vector.shape_cast %34 : vector<1x32x96xbf16> to vector<32x96xbf16>
    %cst_13 = arith.constant dense<0.000000e+00> : vector<16x96xf32>
    %36 = tpu.matmul %33, %35, %cst_13 {dimension_numbers = #tpu.dot_dimension_numbers<[1], [0], [0], [1], [0, 0, 1, 1], [], []>} : vector<16x32xbf16>, vector<32x96xbf16>, vector<16x96xf32> -> vector<16x96xf32>
    %c0_14 = arith.constant 0 : index
    %c0_15 = arith.constant 0 : index
    %c0_16 = arith.constant 0 : index
    %37 = vector.load %arg4[%c0_14, %c0_15, %c0_16] : memref<1x1x96xf32, #tpu.memory_space<vmem>>, vector<1x1x96xf32>
    %38 = vector.shape_cast %37 : vector<1x1x96xf32> to vector<1x96xf32>
    %39 = vector.broadcast %38 : vector<1x96xf32> to vector<16x96xf32>
    %40 = arith.addf %36, %39 : vector<16x96xf32>
    %c0_17 = arith.constant 0 : index
    %c0_18 = arith.constant 0 : index
    %c0_19 = arith.constant 0 : index
    %c0_20 = arith.constant 0 : index
    %41 = vector.load %arg7[%c0_17, %c0_18, %c0_19, %c0_20] : memref<1x4x8x32xbf16, #tpu.memory_space<vmem>>, vector<1x4x8x32xbf16>
    %42 = vector.shape_cast %41 : vector<1x4x8x32xbf16> to vector<4x8x32xbf16>
    %43 = vector.extract_strided_slice %40 {offsets = [0, 0], sizes = [8, 96], strides = [1, 1]} : vector<16x96xf32> to vector<8x96xf32>
    %44 = vector.extract_strided_slice %43 {offsets = [0, 0], sizes = [8, 8], strides = [1, 1]} : vector<8x96xf32> to vector<8x8xf32>
    %45 = vector.extract_strided_slice %43 {offsets = [0, 8], sizes = [8, 8], strides = [1, 1]} : vector<8x96xf32> to vector<8x8xf32>
    %46 = vector.extract_strided_slice %43 {offsets = [0, 16], sizes = [8, 8], strides = [1, 1]} : vector<8x96xf32> to vector<8x8xf32>
    %47 = vector.extract_strided_slice %43 {offsets = [0, 24], sizes = [8, 8], strides = [1, 1]} : vector<8x96xf32> to vector<8x8xf32>
    %48 = vector.shape_cast %44 : vector<8x8xf32> to vector<1x8x8xf32>
    %49 = vector.shape_cast %45 : vector<8x8xf32> to vector<1x8x8xf32>
    %50 = vector.shape_cast %46 : vector<8x8xf32> to vector<1x8x8xf32>
    %51 = vector.shape_cast %47 : vector<8x8xf32> to vector<1x8x8xf32>
    %52 = tpu.concatenate %48, %49, %50, %51 in 0 : vector<1x8x8xf32>, vector<1x8x8xf32>, vector<1x8x8xf32>, vector<1x8x8xf32> -> vector<4x8x8xf32>
    %53 = vector.extract_strided_slice %43 {offsets = [0, 32], sizes = [8, 8], strides = [1, 1]} : vector<8x96xf32> to vector<8x8xf32>
    %54 = vector.extract_strided_slice %43 {offsets = [0, 40], sizes = [8, 8], strides = [1, 1]} : vector<8x96xf32> to vector<8x8xf32>
    %55 = vector.extract_strided_slice %43 {offsets = [0, 48], sizes = [8, 8], strides = [1, 1]} : vector<8x96xf32> to vector<8x8xf32>
    %56 = vector.extract_strided_slice %43 {offsets = [0, 56], sizes = [8, 8], strides = [1, 1]} : vector<8x96xf32> to vector<8x8xf32>
    %57 = vector.shape_cast %53 : vector<8x8xf32> to vector<1x8x8xf32>
    %58 = vector.shape_cast %54 : vector<8x8xf32> to vector<1x8x8xf32>
    %59 = vector.shape_cast %55 : vector<8x8xf32> to vector<1x8x8xf32>
    %60 = vector.shape_cast %56 : vector<8x8xf32> to vector<1x8x8xf32>
    %61 = tpu.concatenate %57, %58, %59, %60 in 0 : vector<1x8x8xf32>, vector<1x8x8xf32>, vector<1x8x8xf32>, vector<1x8x8xf32> -> vector<4x8x8xf32>
    %62 = vector.extract_strided_slice %43 {offsets = [0, 64], sizes = [8, 8], strides = [1, 1]} : vector<8x96xf32> to vector<8x8xf32>
    %63 = vector.extract_strided_slice %43 {offsets = [0, 72], sizes = [8, 8], strides = [1, 1]} : vector<8x96xf32> to vector<8x8xf32>
    %64 = vector.extract_strided_slice %43 {offsets = [0, 80], sizes = [8, 8], strides = [1, 1]} : vector<8x96xf32> to vector<8x8xf32>
    %65 = vector.extract_strided_slice %43 {offsets = [0, 88], sizes = [8, 8], strides = [1, 1]} : vector<8x96xf32> to vector<8x8xf32>
    %66 = vector.shape_cast %62 : vector<8x8xf32> to vector<1x8x8xf32>
    %67 = vector.shape_cast %63 : vector<8x8xf32> to vector<1x8x8xf32>
    %68 = vector.shape_cast %64 : vector<8x8xf32> to vector<1x8x8xf32>
    %69 = vector.shape_cast %65 : vector<8x8xf32> to vector<1x8x8xf32>
    %70 = tpu.concatenate %66, %67, %68, %69 in 0 : vector<1x8x8xf32>, vector<1x8x8xf32>, vector<1x8x8xf32>, vector<1x8x8xf32> -> vector<4x8x8xf32>
    %71 = arith.truncf %52 : vector<4x8x8xf32> to vector<4x8x8xbf16>
    %72 = arith.truncf %61 : vector<4x8x8xf32> to vector<4x8x8xbf16>
    "tpu.trace_start"() <{level = 10 : i32, message = "hsd,htd->hst"}> : () -> ()
    %cst_21 = arith.constant dense<0.000000e+00> : vector<4x8x8xf32>
    %73 = tpu.matmul %71, %72, %cst_21 {dimension_numbers = #tpu.dot_dimension_numbers<[2], [2], [1], [1], [0, 0, 0, 1, 1, 1], [0], [0]>} : vector<4x8x8xbf16>, vector<4x8x8xbf16>, vector<4x8x8xf32> -> vector<4x8x8xf32>
    "tpu.trace_stop"() : () -> ()
    %cst_22 = arith.constant 0.353553385 : f32
    %74 = vector.broadcast %cst_22 : f32 to vector<4x8x8xf32>
    %75 = arith.mulf %73, %74 : vector<4x8x8xf32>
    %cst_23 = arith.constant dense<0xFF800000> : vector<4x8xf32>
    %76 = vector.multi_reduction <maximumf>, %75, %cst_23 [2] : vector<4x8x8xf32> to vector<4x8xf32>
    %77 = vector.shape_cast %76 : vector<4x8xf32> to vector<4x8x1xf32>
    %78 = vector.broadcast %77 : vector<4x8x1xf32> to vector<4x8x8xf32>
    %79 = arith.subf %75, %78 : vector<4x8x8xf32>
    %80 = math.exp %79 : vector<4x8x8xf32>
    %cst_24 = arith.constant dense<0.000000e+00> : vector<4x8xf32>
    %81 = vector.multi_reduction <add>, %80, %cst_24 [2] : vector<4x8x8xf32> to vector<4x8xf32>
    %82 = vector.shape_cast %81 : vector<4x8xf32> to vector<4x8x1xf32>
    %83 = tpu.reciprocal %82 {approx = true} : vector<4x8x1xf32> -> vector<4x8x1xf32>
    %84 = vector.broadcast %83 : vector<4x8x1xf32> to vector<4x8x8xf32>
    %85 = arith.mulf %80, %84 : vector<4x8x8xf32>
    %86 = arith.truncf %85 : vector<4x8x8xf32> to vector<4x8x8xbf16>
    %87 = arith.truncf %70 : vector<4x8x8xf32> to vector<4x8x8xbf16>
    "tpu.trace_start"() <{level = 10 : i32, message = "hst,htd->hsd"}> : () -> ()
    %cst_25 = arith.constant dense<0.000000e+00> : vector<4x8x8xf32>
    %88 = tpu.matmul %86, %87, %cst_25 {dimension_numbers = #tpu.dot_dimension_numbers<[2], [1], [1], [2], [0, 0, 0, 1, 1, 2], [0], [0]>} : vector<4x8x8xbf16>, vector<4x8x8xbf16>, vector<4x8x8xf32> -> vector<4x8x8xf32>
    "tpu.trace_stop"() : () -> ()
    %89 = arith.truncf %88 : vector<4x8x8xf32> to vector<4x8x8xbf16>
    "tpu.trace_start"() <{level = 10 : i32, message = "hsd,hde->hse"}> : () -> ()
    %cst_26 = arith.constant dense<0.000000e+00> : vector<4x8x32xf32>
    %90 = tpu.matmul %89, %42, %cst_26 {dimension_numbers = #tpu.dot_dimension_numbers<[2], [1], [1], [2], [0, 0, 0, 1, 1, 2], [0], [0]>} : vector<4x8x8xbf16>, vector<4x8x32xbf16>, vector<4x8x32xf32> -> vector<4x8x32xf32>
    "tpu.trace_stop"() : () -> ()
    %cst_27 = arith.constant dense<0.000000e+00> : vector<8x32xf32>
    %91 = vector.multi_reduction <add>, %90, %cst_27 [0] : vector<4x8x32xf32> to vector<8x32xf32>
    %92 = vector.extract_strided_slice %40 {offsets = [8, 0], sizes = [8, 96], strides = [1, 1]} : vector<16x96xf32> to vector<8x96xf32>
    %93 = vector.extract_strided_slice %92 {offsets = [0, 0], sizes = [8, 8], strides = [1, 1]} : vector<8x96xf32> to vector<8x8xf32>
    %94 = vector.extract_strided_slice %92 {offsets = [0, 8], sizes = [8, 8], strides = [1, 1]} : vector<8x96xf32> to vector<8x8xf32>
    %95 = vector.extract_strided_slice %92 {offsets = [0, 16], sizes = [8, 8], strides = [1, 1]} : vector<8x96xf32> to vector<8x8xf32>
    %96 = vector.extract_strided_slice %92 {offsets = [0, 24], sizes = [8, 8], strides = [1, 1]} : vector<8x96xf32> to vector<8x8xf32>
    %97 = vector.shape_cast %93 : vector<8x8xf32> to vector<1x8x8xf32>
    %98 = vector.shape_cast %94 : vector<8x8xf32> to vector<1x8x8xf32>
    %99 = vector.shape_cast %95 : vector<8x8xf32> to vector<1x8x8xf32>
    %100 = vector.shape_cast %96 : vector<8x8xf32> to vector<1x8x8xf32>
    %101 = tpu.concatenate %97, %98, %99, %100 in 0 : vector<1x8x8xf32>, vector<1x8x8xf32>, vector<1x8x8xf32>, vector<1x8x8xf32> -> vector<4x8x8xf32>
    %102 = vector.extract_strided_slice %92 {offsets = [0, 32], sizes = [8, 8], strides = [1, 1]} : vector<8x96xf32> to vector<8x8xf32>
    %103 = vector.extract_strided_slice %92 {offsets = [0, 40], sizes = [8, 8], strides = [1, 1]} : vector<8x96xf32> to vector<8x8xf32>
    %104 = vector.extract_strided_slice %92 {offsets = [0, 48], sizes = [8, 8], strides = [1, 1]} : vector<8x96xf32> to vector<8x8xf32>
    %105 = vector.extract_strided_slice %92 {offsets = [0, 56], sizes = [8, 8], strides = [1, 1]} : vector<8x96xf32> to vector<8x8xf32>
    %106 = vector.shape_cast %102 : vector<8x8xf32> to vector<1x8x8xf32>
    %107 = vector.shape_cast %103 : vector<8x8xf32> to vector<1x8x8xf32>
    %108 = vector.shape_cast %104 : vector<8x8xf32> to vector<1x8x8xf32>
    %109 = vector.shape_cast %105 : vector<8x8xf32> to vector<1x8x8xf32>
    %110 = tpu.concatenate %106, %107, %108, %109 in 0 : vector<1x8x8xf32>, vector<1x8x8xf32>, vector<1x8x8xf32>, vector<1x8x8xf32> -> vector<4x8x8xf32>
    %111 = vector.extract_strided_slice %92 {offsets = [0, 64], sizes = [8, 8], strides = [1, 1]} : vector<8x96xf32> to vector<8x8xf32>
    %112 = vector.extract_strided_slice %92 {offsets = [0, 72], sizes = [8, 8], strides = [1, 1]} : vector<8x96xf32> to vector<8x8xf32>
    %113 = vector.extract_strided_slice %92 {offsets = [0, 80], sizes = [8, 8], strides = [1, 1]} : vector<8x96xf32> to vector<8x8xf32>
    %114 = vector.extract_strided_slice %92 {offsets = [0, 88], sizes = [8, 8], strides = [1, 1]} : vector<8x96xf32> to vector<8x8xf32>
    %115 = vector.shape_cast %111 : vector<8x8xf32> to vector<1x8x8xf32>
    %116 = vector.shape_cast %112 : vector<8x8xf32> to vector<1x8x8xf32>
    %117 = vector.shape_cast %113 : vector<8x8xf32> to vector<1x8x8xf32>
    %118 = vector.shape_cast %114 : vector<8x8xf32> to vector<1x8x8xf32>
    %119 = tpu.concatenate %115, %116, %117, %118 in 0 : vector<1x8x8xf32>, vector<1x8x8xf32>, vector<1x8x8xf32>, vector<1x8x8xf32> -> vector<4x8x8xf32>
    %120 = arith.truncf %101 : vector<4x8x8xf32> to vector<4x8x8xbf16>
    %121 = arith.truncf %110 : vector<4x8x8xf32> to vector<4x8x8xbf16>
    "tpu.trace_start"() <{level = 10 : i32, message = "hsd,htd->hst"}> : () -> ()
    %cst_28 = arith.constant dense<0.000000e+00> : vector<4x8x8xf32>
    %122 = tpu.matmul %120, %121, %cst_28 {dimension_numbers = #tpu.dot_dimension_numbers<[2], [2], [1], [1], [0, 0, 0, 1, 1, 1], [0], [0]>} : vector<4x8x8xbf16>, vector<4x8x8xbf16>, vector<4x8x8xf32> -> vector<4x8x8xf32>
    "tpu.trace_stop"() : () -> ()
    %cst_29 = arith.constant 0.353553385 : f32
    %123 = vector.broadcast %cst_29 : f32 to vector<4x8x8xf32>
    %124 = arith.mulf %122, %123 : vector<4x8x8xf32>
    %cst_30 = arith.constant dense<0xFF800000> : vector<4x8xf32>
    %125 = vector.multi_reduction <maximumf>, %124, %cst_30 [2] : vector<4x8x8xf32> to vector<4x8xf32>
    %126 = vector.shape_cast %125 : vector<4x8xf32> to vector<4x8x1xf32>
    %127 = vector.broadcast %126 : vector<4x8x1xf32> to vector<4x8x8xf32>
    %128 = arith.subf %124, %127 : vector<4x8x8xf32>
    %129 = math.exp %128 : vector<4x8x8xf32>
    %cst_31 = arith.constant dense<0.000000e+00> : vector<4x8xf32>
    %130 = vector.multi_reduction <add>, %129, %cst_31 [2] : vector<4x8x8xf32> to vector<4x8xf32>
    %131 = vector.shape_cast %130 : vector<4x8xf32> to vector<4x8x1xf32>
    %132 = tpu.reciprocal %131 {approx = true} : vector<4x8x1xf32> -> vector<4x8x1xf32>
    %133 = vector.broadcast %132 : vector<4x8x1xf32> to vector<4x8x8xf32>
    %134 = arith.mulf %129, %133 : vector<4x8x8xf32>
    %135 = arith.truncf %134 : vector<4x8x8xf32> to vector<4x8x8xbf16>
    %136 = arith.truncf %119 : vector<4x8x8xf32> to vector<4x8x8xbf16>
    "tpu.trace_start"() <{level = 10 : i32, message = "hst,htd->hsd"}> : () -> ()
    %cst_32 = arith.constant dense<0.000000e+00> : vector<4x8x8xf32>
    %137 = tpu.matmul %135, %136, %cst_32 {dimension_numbers = #tpu.dot_dimension_numbers<[2], [1], [1], [2], [0, 0, 0, 1, 1, 2], [0], [0]>} : vector<4x8x8xbf16>, vector<4x8x8xbf16>, vector<4x8x8xf32> -> vector<4x8x8xf32>
    "tpu.trace_stop"() : () -> ()
    %138 = arith.truncf %137 : vector<4x8x8xf32> to vector<4x8x8xbf16>
    "tpu.trace_start"() <{level = 10 : i32, message = "hsd,hde->hse"}> : () -> ()
    %cst_33 = arith.constant dense<0.000000e+00> : vector<4x8x32xf32>
    %139 = tpu.matmul %138, %42, %cst_33 {dimension_numbers = #tpu.dot_dimension_numbers<[2], [1], [1], [2], [0, 0, 0, 1, 1, 2], [0], [0]>} : vector<4x8x8xbf16>, vector<4x8x32xbf16>, vector<4x8x32xf32> -> vector<4x8x32xf32>
    "tpu.trace_stop"() : () -> ()
    %cst_34 = arith.constant dense<0.000000e+00> : vector<8x32xf32>
    %140 = vector.multi_reduction <add>, %139, %cst_34 [0] : vector<4x8x32xf32> to vector<8x32xf32>
    %141 = tpu.concatenate %91, %140 in 0 : vector<8x32xf32>, vector<8x32xf32> -> vector<16x32xf32>
    %142 = vector.broadcast %9 : vector<1x32xf32> to vector<16x32xf32>
    %143 = arith.addf %141, %142 : vector<16x32xf32>
    %144 = arith.addf %143, %4 : vector<16x32xf32>
    %145 = arith.truncf %144 : vector<16x32xf32> to vector<16x32xbf16>
    %c0_35 = arith.constant 0 : index
    %c0_36 = arith.constant 0 : index
    %c0_37 = arith.constant 0 : index
    %146 = vector.load %arg8[%c0_35, %c0_36, %c0_37] : memref<1x32x128xbf16, #tpu.memory_space<vmem>>, vector<1x32x128xbf16>
    %147 = vector.shape_cast %146 : vector<1x32x128xbf16> to vector<32x128xbf16>
    %cst_38 = arith.constant dense<0.000000e+00> : vector<16x128xf32>
    %148 = tpu.matmul %145, %147, %cst_38 {dimension_numbers = #tpu.dot_dimension_numbers<[1], [0], [0], [1], [0, 0, 1, 1], [], []>} : vector<16x32xbf16>, vector<32x128xbf16>, vector<16x128xf32> -> vector<16x128xf32>
    %c0_39 = arith.constant 0 : index
    %c0_40 = arith.constant 0 : index
    %c0_41 = arith.constant 0 : index
    %149 = vector.load %arg5[%c0_39, %c0_40, %c0_41] : memref<1x1x128xf32, #tpu.memory_space<vmem>>, vector<1x1x128xf32>
    %150 = vector.shape_cast %149 : vector<1x1x128xf32> to vector<1x128xf32>
    %151 = vector.broadcast %150 : vector<1x128xf32> to vector<16x128xf32>
    %152 = arith.addf %148, %151 : vector<16x128xf32>
    %cst_42 = arith.constant 5.000000e-01 : f32
    %153 = vector.broadcast %cst_42 : f32 to vector<16x128xf32>
    %154 = arith.mulf %153, %152 : vector<16x128xf32>
    %cst_43 = arith.constant 0.707106769 : f32
    %155 = vector.broadcast %cst_43 : f32 to vector<16x128xf32>
    %156 = arith.mulf %152, %155 : vector<16x128xf32>
    %cst_44 = arith.constant 0.000000e+00 : f32
    %157 = vector.broadcast %cst_44 : f32 to vector<16x128xf32>
    %158 = arith.cmpf oge, %156, %157 : vector<16x128xf32>
    %cst_45 = arith.constant 1.000000e+00 : f32
    %cst_46 = arith.constant -1.000000e+00 : f32
    %159 = vector.broadcast %cst_45 : f32 to vector<16x128xf32>
    %160 = vector.broadcast %cst_46 : f32 to vector<16x128xf32>
    %161 = arith.select %158, %159, %160 : vector<16x128xi1>, vector<16x128xf32>
    %162 = math.absf %156 : vector<16x128xf32>
    %cst_47 = arith.constant 0.327591091 : f32
    %163 = vector.broadcast %cst_47 : f32 to vector<16x128xf32>
    %164 = arith.mulf %163, %162 : vector<16x128xf32>
    %cst_48 = arith.constant 1.000000e+00 : f32
    %165 = vector.broadcast %cst_48 : f32 to vector<16x128xf32>
    %166 = arith.addf %165, %164 : vector<16x128xf32>
    %cst_49 = arith.constant 1.000000e+00 : f32
    %167 = vector.broadcast %cst_49 : f32 to vector<16x128xf32>
    %168 = arith.divf %167, %166 : vector<16x128xf32>
    %cst_50 = arith.constant 1.06140542 : f32
    %169 = vector.broadcast %cst_50 : f32 to vector<16x128xf32>
    %170 = arith.mulf %169, %168 : vector<16x128xf32>
    %cst_51 = arith.constant -1.45315206 : f32
    %171 = vector.broadcast %cst_51 : f32 to vector<16x128xf32>
    %172 = arith.addf %170, %171 : vector<16x128xf32>
    %173 = arith.mulf %172, %168 : vector<16x128xf32>
    %cst_52 = arith.constant 1.42141378 : f32
    %174 = vector.broadcast %cst_52 : f32 to vector<16x128xf32>
    %175 = arith.addf %173, %174 : vector<16x128xf32>
    %176 = arith.mulf %175, %168 : vector<16x128xf32>
    %cst_53 = arith.constant -0.284496725 : f32
    %177 = vector.broadcast %cst_53 : f32 to vector<16x128xf32>
    %178 = arith.addf %176, %177 : vector<16x128xf32>
    %179 = arith.mulf %178, %168 : vector<16x128xf32>
    %cst_54 = arith.constant 0.254829586 : f32
    %180 = vector.broadcast %cst_54 : f32 to vector<16x128xf32>
    %181 = arith.addf %179, %180 : vector<16x128xf32>
    %182 = arith.mulf %181, %168 : vector<16x128xf32>
    %cst_55 = arith.constant 0.000000e+00 : f32
    %183 = vector.broadcast %cst_55 : f32 to vector<16x128xf32>
    %184 = arith.subf %183, %162 : vector<16x128xf32>
    %185 = arith.mulf %184, %162 : vector<16x128xf32>
    %186 = math.exp %185 : vector<16x128xf32>
    %187 = arith.mulf %182, %186 : vector<16x128xf32>
    %cst_56 = arith.constant 1.000000e+00 : f32
    %188 = vector.broadcast %cst_56 : f32 to vector<16x128xf32>
    %189 = arith.subf %188, %187 : vector<16x128xf32>
    %190 = arith.mulf %161, %189 : vector<16x128xf32>
    %cst_57 = arith.constant 1.000000e+00 : f32
    %191 = vector.broadcast %cst_57 : f32 to vector<16x128xf32>
    %192 = arith.addf %191, %190 : vector<16x128xf32>
    %193 = arith.mulf %154, %192 : vector<16x128xf32>
    %194 = arith.truncf %193 : vector<16x128xf32> to vector<16x128xbf16>
    %c0_58 = arith.constant 0 : index
    %c0_59 = arith.constant 0 : index
    %c0_60 = arith.constant 0 : index
    %195 = vector.load %arg9[%c0_58, %c0_59, %c0_60] : memref<1x128x32xbf16, #tpu.memory_space<vmem>>, vector<1x128x32xbf16>
    %196 = vector.shape_cast %195 : vector<1x128x32xbf16> to vector<128x32xbf16>
    %cst_61 = arith.constant dense<0.000000e+00> : vector<16x32xf32>
    %197 = tpu.matmul %194, %196, %cst_61 {dimension_numbers = #tpu.dot_dimension_numbers<[1], [0], [0], [1], [0, 0, 1, 1], [], []>} : vector<16x128xbf16>, vector<128x32xbf16>, vector<16x32xf32> -> vector<16x32xf32>
    %198 = vector.broadcast %10 : vector<1x32xf32> to vector<16x32xf32>
    %199 = arith.addf %197, %198 : vector<16x32xf32>
    %200 = arith.addf %199, %144 : vector<16x32xf32>
    %201 = vector.shape_cast %200 : vector<16x32xf32> to vector<2x8x32xf32>
    %c0_62 = arith.constant 0 : index
    %c0_63 = arith.constant 0 : index
    %c0_64 = arith.constant 0 : index
    %202 = vector.load %arg10[%c0_62, %c0_63, %c0_64] : memref<2x8x32xf32, #tpu.memory_space<vmem>>, vector<2x8x32xf32>
    tpu.vector_store %arg10[%c0_62, %c0_63, %c0_64], %201 {strides = array<i32>} : memref<2x8x32xf32, #tpu.memory_space<vmem>>, vector<2x8x32xf32>,
    return
  }
  func.func @transform_0(%arg0: i32, %arg1: i32) -> (i32, i32, i32) {
    %c0_i32 = arith.constant 0 : i32
    %c0_i32_0 = arith.constant 0 : i32
    %c0_i32_1 = arith.constant 0 : i32
    return %arg0, %c0_i32, %c0_i32_0 : i32, i32, i32
  }
  func.func @transform_1(%arg0: i32, %arg1: i32) -> (i32, i32, i32) {
    %c0_i32 = arith.constant 0 : i32
    %c0_i32_0 = arith.constant 0 : i32
    %c0_i32_1 = arith.constant 0 : i32
    return %arg1, %c0_i32, %c0_i32_0 : i32, i32, i32
  }
  func.func @transform_2(%arg0: i32, %arg1: i32) -> (i32, i32, i32) {
    %c0_i32 = arith.constant 0 : i32
    %c0_i32_0 = arith.constant 0 : i32
    %c0_i32_1 = arith.constant 0 : i32
    return %arg1, %c0_i32, %c0_i32_0 : i32, i32, i32
  }
  func.func @transform_3(%arg0: i32, %arg1: i32) -> (i32, i32, i32) {
    %c0_i32 = arith.constant 0 : i32
    %c0_i32_0 = arith.constant 0 : i32
    %c0_i32_1 = arith.constant 0 : i32
    return %arg1, %c0_i32, %c0_i32_0 : i32, i32, i32
  }
  func.func @transform_4(%arg0: i32, %arg1: i32) -> (i32, i32, i32) {
    %c0_i32 = arith.constant 0 : i32
    %c0_i32_0 = arith.constant 0 : i32
    %c0_i32_1 = arith.constant 0 : i32
    return %arg1, %c0_i32, %c0_i32_0 : i32, i32, i32
  }
  func.func @transform_5(%arg0: i32, %arg1: i32) -> (i32, i32, i32, i32) {
    %c0_i32 = arith.constant 0 : i32
    %c0_i32_0 = arith.constant 0 : i32
    %c0_i32_1 = arith.constant 0 : i32
    %c0_i32_2 = arith.constant 0 : i32
    return %arg1, %c0_i32, %c0_i32_0, %c0_i32_1 : i32, i32, i32, i32
  }
  func.func @transform_6(%arg0: i32, %arg1: i32) -> (i32, i32, i32) {
    %c0_i32 = arith.constant 0 : i32
    %c0_i32_0 = arith.constant 0 : i32
    %c0_i32_1 = arith.constant 0 : i32
    return %arg1, %c0_i32, %c0_i32_0 : i32, i32, i32
  }
  func.func @transform_7(%arg0: i32, %arg1: i32) -> (i32, i32, i32) {
    %c0_i32 = arith.constant 0 : i32
    %c0_i32_0 = arith.constant 0 : i32
    %c0_i32_1 = arith.constant 0 : i32
    return %arg1, %c0_i32, %c0_i32_0 : i32, i32, i32
  }
  func.func @transform_8(%arg0: i32, %arg1: i32) -> (i32, i32, i32) {
    %c0_i32 = arith.constant 0 : i32
    %c0_i32_0 = arith.constant 0 : i32
    %c0_i32_1 = arith.constant 0 : i32
    return %arg0, %c0_i32, %c0_i32_0 : i32, i32, i32
  }
}

</mosaic_0001>

<llo_original>
// kernel: tpu_custom_call.1
$region0: #{tpu_custom_call.1}
  #allocation0 [shape = 'u32[]', space=smem, size = 0x4, offset = 0x4, fixed_abs, tag = 'smem constant byte address 0x4 - core index']
  #allocation1 [shape = 'u32[144,128]{1,0:T(1,128)}', space=vmem, size = 0x12000, scoped, tag = 'internal scratch']
  %s0 = inlined_call_operand.hbm [shape: f32[2,8,32], index: 0, kind: input, shape index: {}]
  %s1 = inlined_call_operand.hbm [shape: f32[2,4,32], index: 1, kind: input, shape index: {}]
  %s2 = inlined_call_operand.hbm [shape: f32[2,1,96], index: 2, kind: input, shape index: {}]
  %s3 = inlined_call_operand.hbm [shape: f32[2,1,128], index: 3, kind: input, shape index: {}]
  %s4 = inlined_call_operand.hbm [shape: bf16[2,32,96], index: 4, kind: input, shape index: {}]
  %s5 = inlined_call_operand.hbm [shape: bf16[2,4,8,32], index: 5, kind: input, shape index: {}]
  %s6 = inlined_call_operand.hbm [shape: bf16[2,32,128], index: 6, kind: input, shape index: {}]
  %s7 = inlined_call_operand.hbm [shape: bf16[2,128,32], index: 7, kind: input, shape index: {}]
  %s8 = inlined_call_operand.hbm [shape: f32[2,8,32], index: 8, kind: output, shape index: {}]
  %s9 = sld [smem:[#allocation0]]
  $region101: #{tpu_custom_call.1} parent=0
    _
  %s11 = ssub.s32 1, %s9
  %s12 = scalar_select 0, %s11, %s9
  $region1: #{tpu_custom_call.1} parent=0
    #allocation2 [shape = 'u8[8192]{0}', space=vmem, size = 0x2000, scoped, tag = 'input window, operand 0, single buffered']
    #allocation3 [shape = 's32[2]{0}', space=sflag, size = 0x8, scoped, tag = 'scoped memory for tpu_custom_call.1']
    #allocation4 [shape = 's32[2]{0}', space=sflag, size = 0x8, scoped, tag = 'scoped memory for tpu_custom_call.1']
    #allocation5 [shape = 'u8[4096]{0}', space=vmem, size = 0x1000, scoped, tag = 'input window, operand 1']
    #allocation6 [shape = 's32[2]{0}', space=sflag, size = 0x8, scoped, tag = 'scoped memory for tpu_custom_call.1']
    #allocation7 [shape = 'u8[1024]{0}', space=vmem, size = 0x400, scoped, tag = 'input window, operand 2']
    #allocation8 [shape = 'u8[1024]{0}', space=vmem, size = 0x400, scoped, tag = 'input window, operand 3']
    #allocation9 [shape = 's32[2]{0}', space=sflag, size = 0x8, scoped, tag = 'scoped memory for tpu_custom_call.1']
    #allocation10 [shape = 'u8[16384]{0}', space=vmem, size = 0x4000, scoped, tag = 'input window, operand 4']
    #allocation11 [shape = 'u8[16384]{0}', space=vmem, size = 0x4000, scoped, tag = 'input window, operand 5']
    #allocation12 [shape = 's32[2]{0}', space=sflag, size = 0x8, scoped, tag = 'scoped memory for tpu_custom_call.1']
    #allocation13 [shape = 'u8[16384]{0}', space=vmem, size = 0x4000, scoped, tag = 'input window, operand 6']
    #allocation14 [shape = 'u8[65536]{0}', space=vmem, size = 0x10000, scoped, tag = 'input window, operand 7']
    #allocation15 [shape = 's32[2]{0}', space=sflag, size = 0x8, scoped, tag = 'scoped memory for tpu_custom_call.1']
    #allocation16 [shape = 'u8[8192]{0}', space=vmem, size = 0x2000, scoped, tag = 'output window, operand 0, single buffered']
    %13 = vsyncpa [#allocation3], 0
    %14 = vsyncpa [#allocation6], 0
    %s15 = scalar_lea.sflag [#allocation6], 1
    %16 = vsyncpa %s15, 0
    %17 = vsyncpa [#allocation9], 0
    %s18 = scalar_lea.sflag [#allocation9], 1
    %19 = vsyncpa %s18, 0
    %20 = vsyncpa [#allocation12], 0
    %s21 = scalar_lea.sflag [#allocation12], 1
    %22 = vsyncpa %s21, 0
    %23 = vsyncpa [#allocation15], 0
    %s24 = scalar_lea.sflag [#allocation15], 1
    %25 = vsyncpa %s24, 0
    %26 = vsyncpa [#allocation4], 0
    loop: start=0, step=1, limit=4
    $region2: #{tpu_custom_call.1} parent=1 // loop_pre_header
      _
    $region3: #{tpu_custom_call.1} parent=1 // loop_header
      %s28 = sphi 0, %s32
      %p29 = scmp.ge.s32.totalorder %s28, 4
      %s35 = sphi 0, %s47
      %s36 = sphi 0, %s43
      %s37 = sphi 0, %s35
      %s38 = sphi 0, %s36
      %s39 = sphi 0, %s37
      %s40 = sphi 0, %s38
      %s50 = sphi 0, %s52
      %s53 = sphi 0, %s50
      %s54 = sphi 0, %s53
      %s70 = sphi 0, %s54
      %s76 = sphi 0, %s78
      %s79 = sphi 0, %s76
      %s80 = sphi 0, %s79
      %s96 = sphi 0, %s80
      %s102 = sphi 0, %s104
      %s105 = sphi 0, %s102
      %s106 = sphi 0, %s105
      %s122 = sphi 0, %s106
      %s128 = sphi 0, %s130
      %s131 = sphi 0, %s128
      %s132 = sphi 0, %s131
      %s148 = sphi 0, %s132
      %s154 = sphi 0, %s156
      %s157 = sphi 0, %s154
      %s158 = sphi 0, %s157
      %s174 = sphi 0, %s158
      %s180 = sphi 0, %s182
      %s183 = sphi 0, %s180
      %s184 = sphi 0, %s183
      %s200 = sphi 0, %s184
      %s206 = sphi 0, %s208
      %s209 = sphi 0, %s206
      %s210 = sphi 0, %s209
      %s226 = sphi 0, %s210
      %s232 = sphi 0, %s234
      %s235 = sphi 0, %s232
      %s236 = sphi 0, %s235
      %s252 = sphi 0, %s236
      %s258 = sphi 0, %s260
      %s261 = sphi 0, %s258
      %s262 = sphi 0, %s261
      %s278 = sphi 0, %s262
    $region4: #{tpu_custom_call.1} parent=1 // loop_header_branch
      %31 = sbr.rel (%p29) target = $region8
    $region5: #{tpu_custom_call.1} parent=1 // loop_body
      %s33 = ssub.s32 %s28, 1
      %s34 = ssub.s32 %s28, 2
      %s41 = sadd.s32 1, %s36
      %p42 = scmp.ge.s32.totalorder %s41, 2
      %s43 = scalar_select %p42, 0, %s41
      %s44 = sadd.s32 1, %s35
      %s45 = scalar_select %p42, %s44, %s35
      %p46 = scmp.ge.s32.totalorder %s45, 1
      %s47 = scalar_select %p46, 0, %s45
      %s48 = ssub.s32 %s35, %s47
      %p49 = scmp.eq.s32.totalorder %s48, 0
      %s51 = sadd.s32 %s50, 1
      %s52 = scalar_select %p49, %s50, %s51
      %p55 = pneg %p49
      %p56 = scmp.eq.s32.totalorder %s28, 1
      %p57 = por %p55, %p56
      %p58 = scmp.ne.s32.totalorder %s50, %s53
      %p59 = scmp.eq.s32.totalorder %s28, 0
      %p60 = por %p58, %p59
      %p61 = scmp.ne.s32.totalorder %s50, %s53
      %p62 = scmp.eq.s32.totalorder %s33, 1
      %p63 = por %p61, %p62
      %p64 = scmp.ne.s32.totalorder %s53, %s54
      %p65 = scmp.eq.s32.totalorder %s33, 0
      %p66 = por %p64, %p65
      %p67 = scmp.ne.s32.totalorder %s53, %s54
      %p68 = scmp.eq.s32.totalorder %s34, 1
      %p69 = por %p67, %p68
      %p71 = scmp.ne.s32.totalorder %s54, %s70
      %p72 = scmp.eq.s32.totalorder %s34, 0
      %p73 = por %p71, %p72
      %s74 = ssub.s32 %s36, %s43
      %p75 = scmp.eq.s32.totalorder %s74, 0
      %s77 = sadd.s32 %s76, 1
      %s78 = scalar_select %p75, %s76, %s77
      %p81 = pneg %p75
      %p82 = scmp.eq.s32.totalorder %s28, 1
      %p83 = por %p81, %p82
      %p84 = scmp.ne.s32.totalorder %s76, %s79
      %p85 = scmp.eq.s32.totalorder %s28, 0
      %p86 = por %p84, %p85
      %p87 = scmp.ne.s32.totalorder %s76, %s79
      %p88 = scmp.eq.s32.totalorder %s33, 1
      %p89 = por %p87, %p88
      %p90 = scmp.ne.s32.totalorder %s79, %s80
      %p91 = scmp.eq.s32.totalorder %s33, 0
      %p92 = por %p90, %p91
      %p93 = scmp.ne.s32.totalorder %s79, %s80
      %p94 = scmp.eq.s32.totalorder %s34, 1
      %p95 = por %p93, %p94
      %p97 = scmp.ne.s32.totalorder %s80, %s96
      %p98 = scmp.eq.s32.totalorder %s34, 0
      %p99 = por %p97, %p98
      %s100 = ssub.s32 %s36, %s43
      %p101 = scmp.eq.s32.totalorder %s100, 0
      %s103 = sadd.s32 %s102, 1
      %s104 = scalar_select %p101, %s102, %s103
      %p107 = pneg %p101
      %p108 = scmp.eq.s32.totalorder %s28, 1
      %p109 = por %p107, %p108
      %p110 = scmp.ne.s32.totalorder %s102, %s105
      %p111 = scmp.eq.s32.totalorder %s28, 0
      %p112 = por %p110, %p111
      %p113 = scmp.ne.s32.totalorder %s102, %s105
      %p114 = scmp.eq.s32.totalorder %s33, 1
      %p115 = por %p113, %p114
      %p116 = scmp.ne.s32.totalorder %s105, %s106
      %p117 = scmp.eq.s32.totalorder %s33, 0
      %p118 = por %p116, %p117
      %p119 = scmp.ne.s32.totalorder %s105, %s106
      %p120 = scmp.eq.s32.totalorder %s34, 1
      %p121 = por %p119, %p120
      %p123 = scmp.ne.s32.totalorder %s106, %s122
      %p124 = scmp.eq.s32.totalorder %s34, 0
      %p125 = por %p123, %p124
      %s126 = ssub.s32 %s36, %s43
      %p127 = scmp.eq.s32.totalorder %s126, 0
      %s129 = sadd.s32 %s128, 1
      %s130 = scalar_select %p127, %s128, %s129
      %p133 = pneg %p127
      %p134 = scmp.eq.s32.totalorder %s28, 1
      %p135 = por %p133, %p134
      %p136 = scmp.ne.s32.totalorder %s128, %s131
      %p137 = scmp.eq.s32.totalorder %s28, 0
      %p138 = por %p136, %p137
      %p139 = scmp.ne.s32.totalorder %s128, %s131
      %p140 = scmp.eq.s32.totalorder %s33, 1
      %p141 = por %p139, %p140
      %p142 = scmp.ne.s32.totalorder %s131, %s132
      %p143 = scmp.eq.s32.totalorder %s33, 0
      %p144 = por %p142, %p143
      %p145 = scmp.ne.s32.totalorder %s131, %s132
      %p146 = scmp.eq.s32.totalorder %s34, 1
      %p147 = por %p145, %p146
      %p149 = scmp.ne.s32.totalorder %s132, %s148
      %p150 = scmp.eq.s32.totalorder %s34, 0
      %p151 = por %p149, %p150
      %s152 = ssub.s32 %s36, %s43
      %p153 = scmp.eq.s32.totalorder %s152, 0
      %s155 = sadd.s32 %s154, 1
      %s156 = scalar_select %p153, %s154, %s155
      %p159 = pneg %p153
      %p160 = scmp.eq.s32.totalorder %s28, 1
      %p161 = por %p159, %p160
      %p162 = scmp.ne.s32.totalorder %s154, %s157
      %p163 = scmp.eq.s32.totalorder %s28, 0
      %p164 = por %p162, %p163
      %p165 = scmp.ne.s32.totalorder %s154, %s157
      %p166 = scmp.eq.s32.totalorder %s33, 1
      %p167 = por %p165, %p166
      %p168 = scmp.ne.s32.totalorder %s157, %s158
      %p169 = scmp.eq.s32.totalorder %s33, 0
      %p170 = por %p168, %p169
      %p171 = scmp.ne.s32.totalorder %s157, %s158
      %p172 = scmp.eq.s32.totalorder %s34, 1
      %p173 = por %p171, %p172
      %p175 = scmp.ne.s32.totalorder %s158, %s174
      %p176 = scmp.eq.s32.totalorder %s34, 0
      %p177 = por %p175, %p176
      %s178 = ssub.s32 %s36, %s43
      %p179 = scmp.eq.s32.totalorder %s178, 0
      %s181 = sadd.s32 %s180, 1
      %s182 = scalar_select %p179, %s180, %s181
      %p185 = pneg %p179
      %p186 = scmp.eq.s32.totalorder %s28, 1
      %p187 = por %p185, %p186
      %p188 = scmp.ne.s32.totalorder %s180, %s183
      %p189 = scmp.eq.s32.totalorder %s28, 0
      %p190 = por %p188, %p189
      %p191 = scmp.ne.s32.totalorder %s180, %s183
      %p192 = scmp.eq.s32.totalorder %s33, 1
      %p193 = por %p191, %p192
      %p194 = scmp.ne.s32.totalorder %s183, %s184
      %p195 = scmp.eq.s32.totalorder %s33, 0
      %p196 = por %p194, %p195
      %p197 = scmp.ne.s32.totalorder %s183, %s184
      %p198 = scmp.eq.s32.totalorder %s34, 1
      %p199 = por %p197, %p198
      %p201 = scmp.ne.s32.totalorder %s184, %s200
      %p202 = scmp.eq.s32.totalorder %s34, 0
      %p203 = por %p201, %p202
      %s204 = ssub.s32 %s36, %s43
      %p205 = scmp.eq.s32.totalorder %s204, 0
      %s207 = sadd.s32 %s206, 1
      %s208 = scalar_select %p205, %s206, %s207
      %p211 = pneg %p205
      %p212 = scmp.eq.s32.totalorder %s28, 1
      %p213 = por %p211, %p212
      %p214 = scmp.ne.s32.totalorder %s206, %s209
      %p215 = scmp.eq.s32.totalorder %s28, 0
      %p216 = por %p214, %p215
      %p217 = scmp.ne.s32.totalorder %s206, %s209
      %p218 = scmp.eq.s32.totalorder %s33, 1
      %p219 = por %p217, %p218
      %p220 = scmp.ne.s32.totalorder %s209, %s210
      %p221 = scmp.eq.s32.totalorder %s33, 0
      %p222 = por %p220, %p221
      %p223 = scmp.ne.s32.totalorder %s209, %s210
      %p224 = scmp.eq.s32.totalorder %s34, 1
      %p225 = por %p223, %p224
      %p227 = scmp.ne.s32.totalorder %s210, %s226
      %p228 = scmp.eq.s32.totalorder %s34, 0
      %p229 = por %p227, %p228
      %s230 = ssub.s32 %s36, %s43
      %p231 = scmp.eq.s32.totalorder %s230, 0
      %s233 = sadd.s32 %s232, 1
      %s234 = scalar_select %p231, %s232, %s233
      %p237 = pneg %p231
      %p238 = scmp.eq.s32.totalorder %s28, 1
      %p239 = por %p237, %p238
      %p240 = scmp.ne.s32.totalorder %s232, %s235
      %p241 = scmp.eq.s32.totalorder %s28, 0
      %p242 = por %p240, %p241
      %p243 = scmp.ne.s32.totalorder %s232, %s235
      %p244 = scmp.eq.s32.totalorder %s33, 1
      %p245 = por %p243, %p244
      %p246 = scmp.ne.s32.totalorder %s235, %s236
      %p247 = scmp.eq.s32.totalorder %s33, 0
      %p248 = por %p246, %p247
      %p249 = scmp.ne.s32.totalorder %s235, %s236
      %p250 = scmp.eq.s32.totalorder %s34, 1
      %p251 = por %p249, %p250
      %p253 = scmp.ne.s32.totalorder %s236, %s252
      %p254 = scmp.eq.s32.totalorder %s34, 0
      %p255 = por %p253, %p254
      %s256 = ssub.s32 %s35, %s47
      %p257 = scmp.eq.s32.totalorder %s256, 0
      %s259 = sadd.s32 %s258, 1
      %s260 = scalar_select %p257, %s258, %s259
      %p263 = pneg %p257
      %p264 = scmp.eq.s32.totalorder %s28, 1
      %p265 = por %p263, %p264
      %p266 = scmp.ne.s32.totalorder %s258, %s261
      %p267 = scmp.eq.s32.totalorder %s28, 0
      %p268 = por %p266, %p267
      %p269 = scmp.ne.s32.totalorder %s258, %s261
      %p270 = scmp.eq.s32.totalorder %s33, 1
      %p271 = por %p269, %p270
      %p272 = scmp.ne.s32.totalorder %s261, %s262
      %p273 = scmp.eq.s32.totalorder %s33, 0
      %p274 = por %p272, %p273
      %p275 = scmp.ne.s32.totalorder %s261, %s262
      %p276 = scmp.eq.s32.totalorder %s34, 1
      %p277 = por %p275, %p276
      %p279 = scmp.ne.s32.totalorder %s262, %s278
      %p280 = scmp.eq.s32.totalorder %s34, 0
      %p281 = por %p279, %p280
      %p282 = scmp.le.s32.totalorder 1, %s28
      %p283 = scmp.lt.s32.totalorder %s28, 3
      %p284 = pnand %p282, %p283
      %p285 = pneg %p284
      // Predicated region
      $region9: #{tpu_custom_call.1} parent=5 // pred_check
        _
      $region10: #{tpu_custom_call.1} parent=5 // pred_check_branch
        %287 = sbr.rel (%p284) target = $region12
      $region11: #{tpu_custom_call.1} parent=5 // pred_region
        %s288 = ssub.s32 %s28, 1
        // Predicated region
        $region13: #{tpu_custom_call.1} parent=11 // pred_check
          %p289 = pneg %p66
        $region14: #{tpu_custom_call.1} parent=11 // pred_check_branch
          %291 = sbr.rel (%p289) target = $region16
        $region15: #{tpu_custom_call.1} parent=11 // pred_region
          %s292 = smul.u32 2, %s37
          %s294 = ssub.s32 256, 256
          %295 = vsyncadd [#allocation3], %s294
          %s296 = smul.addr %s292, 128
          %s297 = scalar_lea.hbm %s0, %s296
          %s298 = sshll.u32 [#allocation2], 4
          %s299 = int_to_ptr.vmem [resolvable:$true] %s298
          %304 = dma.hbm_to_vmem [thread:$0]  %s297, 256, %s299, [#allocation3], 128, 128, 8
        $region16: #{tpu_custom_call.1} parent=11 // pred_fallthru
          _
      $region12: #{tpu_custom_call.1} parent=5 // pred_fallthru
        _
      %p305 = scmp.lt.s32.totalorder %s28, 2
      // Predicated region
      $region17: #{tpu_custom_call.1} parent=5 // pred_check
        %p306 = pneg %p305
      $region18: #{tpu_custom_call.1} parent=5 // pred_check_branch
        %308 = sbr.rel (%p306) target = $region20
      $region19: #{tpu_custom_call.1} parent=5 // pred_region
        // Predicated region
        $region21: #{tpu_custom_call.1} parent=19 // pred_check
          %p309 = pneg %p86
        $region22: #{tpu_custom_call.1} parent=19 // pred_check_branch
          %311 = sbr.rel (%p309) target = $region24
        $region23: #{tpu_custom_call.1} parent=19 // pred_region
          %s312 = sand.u32 %s28, 1
          %s313 = scalar_lea.sflag [#allocation6], %s312
          %s314 = sand.u32 %s76, 1
          %s315 = smul.addr %s314, 4
          %s316 = scalar_lea.vmem [#allocation5], %s315
          %s318 = ssub.s32 64, 64
          %319 = vsyncadd %s313, %s318
          %s320 = smul.addr %s36, 64
          %s321 = scalar_lea.hbm %s1, %s320
          %s323 = sshll.u32 %s316, 4
          %s324 = int_to_ptr.vmem [resolvable:$true] %s323
          %326 = dma.hbm_to_vmem [thread:$0]  %s321, 64, %s324, %s313
        $region24: #{tpu_custom_call.1} parent=19 // pred_fallthru
          _
        // Predicated region
        $region25: #{tpu_custom_call.1} parent=19 // pred_check
          %p327 = pneg %p112
        $region26: #{tpu_custom_call.1} parent=19 // pred_check_branch
          %329 = sbr.rel (%p327) target = $region28
        $region27: #{tpu_custom_call.1} parent=19 // pred_region
          %s330 = sand.u32 %s28, 1
          %s331 = scalar_lea.sflag [#allocation6], %s330
          %s332 = sand.u32 %s102, 1
          %s333 = scalar_lea.vmem [#allocation7], %s332
          %s335 = ssub.s32 16, 16
          %336 = vsyncadd %s331, %s335
          %s337 = smul.addr %s36, 16
          %s338 = scalar_lea.hbm %s2, %s337
          %s340 = sshll.u32 %s333, 4
          %s341 = int_to_ptr.vmem [resolvable:$true] %s340
          %343 = dma.hbm_to_vmem [thread:$0]  %s338, 16, %s341, %s331
        $region28: #{tpu_custom_call.1} parent=19 // pred_fallthru
          _
        // Predicated region
        $region29: #{tpu_custom_call.1} parent=19 // pred_check
          %p344 = pneg %p138
        $region30: #{tpu_custom_call.1} parent=19 // pred_check_branch
          %346 = sbr.rel (%p344) target = $region32
        $region31: #{tpu_custom_call.1} parent=19 // pred_region
          %s347 = sand.u32 %s28, 1
          %s348 = scalar_lea.sflag [#allocation9], %s347
          %s349 = sand.u32 %s128, 1
          %s350 = scalar_lea.vmem [#allocation8], %s349
          %s352 = ssub.s32 16, 16
          %353 = vsyncadd %s348, %s352
          %s354 = smul.addr %s36, 16
          %s355 = scalar_lea.hbm %s3, %s354
          %s357 = sshll.u32 %s350, 4
          %s358 = int_to_ptr.vmem [resolvable:$true] %s357
          %360 = dma.hbm_to_vmem [thread:$0]  %s355, 16, %s358, %s348
        $region32: #{tpu_custom_call.1} parent=19 // pred_fallthru
          _
        // Predicated region
        $region33: #{tpu_custom_call.1} parent=19 // pred_check
          %p361 = pneg %p164
        $region34: #{tpu_custom_call.1} parent=19 // pred_check_branch
          %363 = sbr.rel (%p361) target = $region36
        $region35: #{tpu_custom_call.1} parent=19 // pred_region
          %s364 = sand.u32 %s28, 1
          %s365 = scalar_lea.sflag [#allocation9], %s364
          %s366 = sand.u32 %s154, 1
          %s367 = smul.addr %s366, 16
          %s368 = scalar_lea.vmem [#allocation10], %s367
          %s370 = ssub.s32 256, 256
          %371 = vsyncadd %s365, %s370
          %s372 = smul.addr %s36, 4
          %s373 = smul.addr %s372, 64
          %s374 = scalar_lea.hbm %s4, %s373
          %s375 = sshll.u32 %s368, 4
          %s376 = int_to_ptr.vmem [resolvable:$true] %s375
          %381 = dma.hbm_to_vmem [thread:$0]  %s374, 256, %s376, %s365, 64, 64, 4
        $region36: #{tpu_custom_call.1} parent=19 // pred_fallthru
          _
        // Predicated region
        $region37: #{tpu_custom_call.1} parent=19 // pred_check
          %p382 = pneg %p190
        $region38: #{tpu_custom_call.1} parent=19 // pred_check_branch
          %384 = sbr.rel (%p382) target = $region40
        $region39: #{tpu_custom_call.1} parent=19 // pred_region
          %s385 = sand.u32 %s28, 1
          %s386 = scalar_lea.sflag [#allocation12], %s385
          %s387 = sand.u32 %s180, 1
          %s388 = smul.addr %s387, 16
          %s389 = scalar_lea.vmem [#allocation11], %s388
          %s391 = ssub.s32 256, 256
          %392 = vsyncadd %s386, %s391
          %s393 = smul.addr %s36, 4
          %s394 = smul.addr %s393, 64
          %s395 = scalar_lea.hbm %s5, %s394
          %s396 = sshll.u32 %s389, 4
          %s397 = int_to_ptr.vmem [resolvable:$true] %s396
          %402 = dma.hbm_to_vmem [thread:$0]  %s395, 256, %s397, %s386, 64, 64, 4
        $region40: #{tpu_custom_call.1} parent=19 // pred_fallthru
          _
        // Predicated region
        $region41: #{tpu_custom_call.1} parent=19 // pred_check
          %p403 = pneg %p216
        $region42: #{tpu_custom_call.1} parent=19 // pred_check_branch
          %405 = sbr.rel (%p403) target = $region44
        $region43: #{tpu_custom_call.1} parent=19 // pred_region
          %s406 = sand.u32 %s28, 1
          %s407 = scalar_lea.sflag [#allocation12], %s406
          %s408 = sand.u32 %s206, 1
          %s409 = smul.addr %s408, 16
          %s410 = scalar_lea.vmem [#allocation13], %s409
          %s412 = ssub.s32 256, 256
          %413 = vsyncadd %s407, %s412
          %s414 = smul.addr %s36, 4
          %s415 = smul.addr %s414, 64
          %s416 = scalar_lea.hbm %s6, %s415
          %s417 = sshll.u32 %s410, 4
          %s418 = int_to_ptr.vmem [resolvable:$true] %s417
          %423 = dma.hbm_to_vmem [thread:$0]  %s416, 256, %s418, %s407, 64, 64, 4
        $region44: #{tpu_custom_call.1} parent=19 // pred_fallthru
          _
        // Predicated region
        $region45: #{tpu_custom_call.1} parent=19 // pred_check
          %p424 = pneg %p242
        $region46: #{tpu_custom_call.1} parent=19 // pred_check_branch
          %426 = sbr.rel (%p424) target = $region48
        $region47: #{tpu_custom_call.1} parent=19 // pred_region
          %s427 = sand.u32 %s232, 1
          %s428 = scalar_lea.sflag [#allocation15], %s427
          %s429 = sand.u32 %s232, 1
          %s430 = smul.addr %s429, 64
          %s431 = scalar_lea.vmem [#allocation14], %s430
          %s433 = ssub.s32 1024, 1024
          %434 = vsyncadd %s428, %s433
          %s435 = smul.addr %s36, 16
          %s436 = smul.addr %s435, 64
          %s437 = scalar_lea.hbm %s7, %s436
          %s438 = sshll.u32 %s431, 4
          %s439 = int_to_ptr.vmem [resolvable:$true] %s438
          %444 = dma.hbm_to_vmem [thread:$0]  %s437, 1024, %s439, %s428, 64, 64, 4
        $region48: #{tpu_custom_call.1} parent=19 // pred_fallthru
          _
      $region20: #{tpu_custom_call.1} parent=5 // pred_fallthru
        _
      %p445 = scmp.le.s32.totalorder 1, %s28
      %p446 = scmp.lt.s32.totalorder %s28, 3
      %p447 = pnand %p445, %p446
      %p448 = pneg %p447
      // Predicated region
      $region49: #{tpu_custom_call.1} parent=5 // pred_check
        _
      $region50: #{tpu_custom_call.1} parent=5 // pred_check_branch
        %450 = sbr.rel (%p447) target = $region52
      $region51: #{tpu_custom_call.1} parent=5 // pred_region
        %s451 = ssub.s32 %s28, 1
        // Predicated region
        $region53: #{tpu_custom_call.1} parent=51 // pred_check
          %p452 = pneg %p66
        $region54: #{tpu_custom_call.1} parent=51 // pred_check_branch
          %454 = sbr.rel (%p452) target = $region56
        $region55: #{tpu_custom_call.1} parent=51 // pred_region
          %455 = dma.done [#allocation3], 256
        $region56: #{tpu_custom_call.1} parent=51 // pred_fallthru
          _
        %s456 = sand.u32 %s33, 1
        %s457 = scalar_lea.sflag [#allocation6], %s456
        %s458 = sand.u32 %s79, 1
        %s459 = smul.addr %s458, 4
        %s460 = scalar_lea.vmem [#allocation5], %s459
        // Predicated region
        $region57: #{tpu_custom_call.1} parent=51 // pred_check
          %p461 = pneg %p92
        $region58: #{tpu_custom_call.1} parent=51 // pred_check_branch
          %463 = sbr.rel (%p461) target = $region60
        $region59: #{tpu_custom_call.1} parent=51 // pred_region
          %464 = dma.done %s457, 64
        $region60: #{tpu_custom_call.1} parent=51 // pred_fallthru
          _
        %s465 = sand.u32 %s33, 1
        %s466 = scalar_lea.sflag [#allocation6], %s465
        %s467 = sand.u32 %s105, 1
        %s468 = scalar_lea.vmem [#allocation7], %s467
        // Predicated region
        $region61: #{tpu_custom_call.1} parent=51 // pred_check
          %p469 = pneg %p118
        $region62: #{tpu_custom_call.1} parent=51 // pred_check_branch
          %471 = sbr.rel (%p469) target = $region64
        $region63: #{tpu_custom_call.1} parent=51 // pred_region
          %472 = dma.done %s466, 16
        $region64: #{tpu_custom_call.1} parent=51 // pred_fallthru
          _
        %s473 = sand.u32 %s33, 1
        %s474 = scalar_lea.sflag [#allocation9], %s473
        %s475 = sand.u32 %s131, 1
        %s476 = scalar_lea.vmem [#allocation8], %s475
        // Predicated region
        $region65: #{tpu_custom_call.1} parent=51 // pred_check
          %p477 = pneg %p144
        $region66: #{tpu_custom_call.1} parent=51 // pred_check_branch
          %479 = sbr.rel (%p477) target = $region68
        $region67: #{tpu_custom_call.1} parent=51 // pred_region
          %480 = dma.done %s474, 16
        $region68: #{tpu_custom_call.1} parent=51 // pred_fallthru
          _
        %s481 = sand.u32 %s33, 1
        %s482 = scalar_lea.sflag [#allocation9], %s481
        %s483 = sand.u32 %s157, 1
        %s484 = smul.addr %s483, 16
        %s485 = scalar_lea.vmem [#allocation10], %s484
        // Predicated region
        $region69: #{tpu_custom_call.1} parent=51 // pred_check
          %p486 = pneg %p170
        $region70: #{tpu_custom_call.1} parent=51 // pred_check_branch
          %488 = sbr.rel (%p486) target = $region72
        $region71: #{tpu_custom_call.1} parent=51 // pred_region
          %489 = dma.done %s482, 256
        $region72: #{tpu_custom_call.1} parent=51 // pred_fallthru
          _
        %s490 = sand.u32 %s33, 1
        %s491 = scalar_lea.sflag [#allocation12], %s490
        %s492 = sand.u32 %s183, 1
        %s493 = smul.addr %s492, 16
        %s494 = scalar_lea.vmem [#allocation11], %s493
        // Predicated region
        $region73: #{tpu_custom_call.1} parent=51 // pred_check
          %p495 = pneg %p196
        $region74: #{tpu_custom_call.1} parent=51 // pred_check_branch
          %497 = sbr.rel (%p495) target = $region76
        $region75: #{tpu_custom_call.1} parent=51 // pred_region
          %498 = dma.done %s491, 256
        $region76: #{tpu_custom_call.1} parent=51 // pred_fallthru
          _
        %s499 = sand.u32 %s33, 1
        %s500 = scalar_lea.sflag [#allocation12], %s499
        %s501 = sand.u32 %s209, 1
        %s502 = smul.addr %s501, 16
        %s503 = scalar_lea.vmem [#allocation13], %s502
        // Predicated region
        $region77: #{tpu_custom_call.1} parent=51 // pred_check
          %p504 = pneg %p222
        $region78: #{tpu_custom_call.1} parent=51 // pred_check_branch
          %506 = sbr.rel (%p504) target = $region80
        $region79: #{tpu_custom_call.1} parent=51 // pred_region
          %507 = dma.done %s500, 256
        $region80: #{tpu_custom_call.1} parent=51 // pred_fallthru
          _
        %s508 = sand.u32 %s235, 1
        %s509 = scalar_lea.sflag [#allocation15], %s508
        %s510 = sand.u32 %s235, 1
        %s511 = smul.addr %s510, 64
        %s512 = scalar_lea.vmem [#allocation14], %s511
        // Predicated region
        $region81: #{tpu_custom_call.1} parent=51 // pred_check
          %p513 = pneg %p248
        $region82: #{tpu_custom_call.1} parent=51 // pred_check_branch
          %515 = sbr.rel (%p513) target = $region84
        $region83: #{tpu_custom_call.1} parent=51 // pred_region
          %516 = dma.done %s509, 1024
        $region84: #{tpu_custom_call.1} parent=51 // pred_fallthru
          _
        %p517 = pneg %p66
        %p518 = pneg %p63
        %s519 = sand.u32 %s33, 1
        %s520 = scalar_lea.sflag [#allocation6], %s519
        %s521 = sand.u32 %s79, 1
        %s522 = smul.addr %s521, 4
        %s523 = scalar_lea.vmem [#allocation5], %s522
        %p524 = pneg %p92
        %p525 = pneg %p89
        %s526 = sand.u32 %s33, 1
        %s527 = scalar_lea.sflag [#allocation6], %s526
        %s528 = sand.u32 %s105, 1
        %s529 = scalar_lea.vmem [#allocation7], %s528
        %p530 = pneg %p118
        %p531 = pneg %p115
        %s532 = sand.u32 %s33, 1
        %s533 = scalar_lea.sflag [#allocation9], %s532
        %s534 = sand.u32 %s131, 1
        %s535 = scalar_lea.vmem [#allocation8], %s534
        %p536 = pneg %p144
        %p537 = pneg %p141
        %s538 = sand.u32 %s33, 1
        %s539 = scalar_lea.sflag [#allocation9], %s538
        %s540 = sand.u32 %s157, 1
        %s541 = smul.addr %s540, 16
        %s542 = scalar_lea.vmem [#allocation10], %s541
        %p543 = pneg %p170
        %p544 = pneg %p167
        %s545 = sand.u32 %s33, 1
        %s546 = scalar_lea.sflag [#allocation12], %s545
        %s547 = sand.u32 %s183, 1
        %s548 = smul.addr %s547, 16
        %s549 = scalar_lea.vmem [#allocation11], %s548
        %p550 = pneg %p196
        %p551 = pneg %p193
        %s552 = sand.u32 %s33, 1
        %s553 = scalar_lea.sflag [#allocation12], %s552
        %s554 = sand.u32 %s209, 1
        %s555 = smul.addr %s554, 16
        %s556 = scalar_lea.vmem [#allocation13], %s555
        %p557 = pneg %p222
        %p558 = pneg %p219
        %s559 = sand.u32 %s235, 1
        %s560 = scalar_lea.sflag [#allocation15], %s559
        %s561 = sand.u32 %s235, 1
        %s562 = smul.addr %s561, 64
        %s563 = scalar_lea.vmem [#allocation14], %s562
        %p564 = pneg %p248
        %p565 = pneg %p245
        %p566 = pneg %p274
        %p567 = pneg %p271
        %s568 = smul.u32 2, %s37
        %s569 = smul.u32 2, %s37
        %p571 = scmp.eq.s32.totalorder %s38, 0
        // Predicated region
        $region85: #{tpu_custom_call.1} parent=51 // pred_check
          %p572 = pneg %p571
        $region86: #{tpu_custom_call.1} parent=51 // pred_check_branch
          %574 = sbr.rel (%p572) target = $region88
        $region87: #{tpu_custom_call.1} parent=51 // pred_region
          %v575 = vld [vmem:[#allocation2] sm:$0xff]
          %v576 = vld [vmem:[#allocation2 + $0x8] sm:$0xff]
          %vm577 = vcmask 261120
          %578 = vst.msk [vmem:[#allocation16] sm:$0xff] %vm577, %v575
          %579 = vst.msk [vmem:[#allocation16 + $0x8] sm:$0xff] %vm577, %v576
        $region88: #{tpu_custom_call.1} parent=51 // pred_fallthru
          _
        %v580 = vld [vmem:[#allocation16] sm:$0xff]
        %v581 = vld [vmem:[#allocation16 + $0x8] sm:$0xff]
        %v582 = vld [vmem:[%s460] sm:$0xf]
        %vm583 = vcmask 261120
        %v584 = vsel %vm583, %v580, 0.0
        %585 = vadd.xlane.f32.xlu0 %v584
        %v586 = vpop.xlane.xlu0 %585
        %v587 = vsel %vm583, %v581, 0.0
        %588 = vadd.xlane.f32.xlu0 %v587
        %v589 = vpop.xlane.xlu0 %588
        %v590 = vrcp.pop 32.0
        %v591 = vmul.f32 %v586, %v590
        %v592 = vmul.f32 %v589, %v590
        %v593 = vsub.f32 %v580, %v591
        %v594 = vsub.f32 %v581, %v592
        %v595 = vmul.f32 %v593, %v593
        %v596 = vmul.f32 %v594, %v594
        %v597 = vsel %vm583, %v595, 0.0
        %598 = vadd.xlane.f32.xlu0 %v597
        %v599 = vpop.xlane.xlu0 %598
        %v600 = vsel %vm583, %v596, 0.0
        %601 = vadd.xlane.f32.xlu0 %v600
        %v602 = vpop.xlane.xlu0 %601
        %v603 = vmul.f32 %v599, %v590
        %v604 = vmul.f32 %v602, %v590
        %v605 = vadd.f32 %v603, 1e-05
        %v606 = vadd.f32 %v604, 1e-05
        %v607 = vrsqrt.pop %v605
        %v608 = vrsqrt.pop %v606
        %v609 = vmul.f32 %v593, %v607
        %v610 = vmul.f32 %v594, %v608
        %v611 = vlaneseq
        %v612 = vshrl.u32 %v611, 7
        %v613 = vsub.s32 0, %v612
        %v614 = vrot.slane %v582, %v613
        %v615 = vmul.f32 %v609, %v614
        %v616 = vmul.f32 %v610, %v614
        %v617 = vlaneseq
        %v618 = vshrl.u32 %v617, 7
        %v619 = vsub.s32 1, %v618
        %v620 = vrot.slane %v582, %v619
        %v621 = vadd.f32 %v615, %v620
        %v622 = vadd.f32 %v616, %v620
        %v623 = vpack.c.bf16 %v622, %v621
        %v624 = vld [vmem:[%s485] sm:$0xf]
        %v625 = vld [vmem:[%s485 + $0x4] sm:$0xf]
        %v626 = vld [vmem:[%s485 + $0x8] sm:$0xf]
        %v627 = vld [vmem:[%s485 + $0xc] sm:$0xf]
        %v628 = vld [vmem:[%s468] sm:$0x1]
        %v630 = vlaneseq
        %v631 = vshrl.u32 %v630, 7
        %v632 = vsub.s32 0, %v631
        %v633 = vrot.slane %v628, %v632
        %v639 = vunpack.c.l.b16 %v624
        %v640 = vunpack.c.l.b16 %v625
        %v641 = vunpack.c.l.b16 %v626
        %v642 = vunpack.c.l.b16 %v627
        %v643 = vpack.c.b16 %v640, %v639
        %v644 = vpack.c.b16 %v642, %v641
        %v648 = vsel %vm583, %v623, 0
        %650 = vmatprep.subr.bf16.mxu0 0
        %651 = vmatpush1.bf16.msra.mxu0 %v643
        %652 = vmatprep.subr.bf16.mxu0 0
        %653 = vmatpush1.bf16.msra.mxu0 %v644
        %654 = vmatprep.subr.bf16.mxu0 0
        %655 = vmatpush1.bf16.msra.mxu0 0
        %656 = vmatprep.subr.bf16.mxu0 0
        %657 = vmatpush1.bf16.msra.mxu0 0
        %658 = vmatprep.subr.bf16.mxu0 0
        %659 = vmatpush1.bf16.msra.mxu0 0
        %660 = vmatprep.subr.bf16.mxu0 0
        %661 = vmatpush1.bf16.msra.mxu0 0
        %662 = vmatprep.subr.bf16.mxu0 0
        %663 = vmatpush1.bf16.msra.mxu0 0
        %664 = vmatprep.subr.bf16.mxu0 0
        %665 = vmatpush1.bf16.msra.mxu0 0
        %666 = vmatprep.subr.bf16.mxu0 0
        %667 = vmatpush1.bf16.msra.mxu0 0
        %668 = vmatprep.subr.bf16.mxu0 0
        %669 = vmatpush1.bf16.msra.mxu0 0
        %670 = vmatprep.subr.bf16.mxu0 0
        %671 = vmatpush1.bf16.msra.mxu0 0
        %672 = vmatprep.subr.bf16.mxu0 0
        %673 = vmatpush1.bf16.msra.mxu0 0
        %674 = vmatprep.subr.bf16.mxu0 0
        %675 = vmatpush1.bf16.msra.mxu0 0
        %676 = vmatprep.subr.bf16.mxu0 0
        %677 = vmatpush1.bf16.msra.mxu0 0
        %678 = vmatprep.subr.bf16.mxu0 0
        %679 = vmatpush1.bf16.msra.mxu0 0
        %680 = vmatprep.subr.bf16.mxu0 0
        %681 = vmatpush1.bf16.msra.mxu0 0
        %682 = vmatprep.mubr.bf16.mxu0 0
        %683 = vmatmul.mubr.bf16.gmra.mrb[0].mxu0 %v648
        %v684 = vpop.f32.mrb[0].mxu0
        %v685 = vadd.f32 %v633, %v684
        %v686 = vpop.f32.mrb[0].mxu0
        %v687 = vpop.f32.mrb[0].mxu0
        %v688 = vadd.f32 %v633, %v687
        %v689 = vpop.f32.mrb[0].mxu0
        %690 = vdwg.mxu0
        %v691 = vld [vmem:[%s494] sm:$0xf]
        %v692 = vld [vmem:[%s494 + $0x4] sm:$0xf]
        %v693 = vld [vmem:[%s494 + $0x8] sm:$0xf]
        %v694 = vld [vmem:[%s494 + $0xc] sm:$0xf]
        %696 = vrot.lane.b32.xlu0 %v685, 120
        %v697 = vpop.permute.xlu0 %696
        %699 = vrot.lane.b32.xlu0 %v685, 112
        %v700 = vpop.permute.xlu0 %699
        %702 = vrot.lane.b32.xlu0 %v685, 104
        %v703 = vpop.permute.xlu0 %702
        %v705 = vpack.c.bf16 %v685, %v685
        %v706 = vpack.c.bf16 %v697, %v697
        %v707 = vpack.c.bf16 %v700, %v700
        %v708 = vpack.c.bf16 %v703, %v703
        %710 = vrot.lane.b32.xlu0 %v705, 96
        %v711 = vpop.permute.xlu0 %710
        %vm712 = vcmask 64512
        %v714 = vsel %vm712, %v705, 0
        %v717 = vsel %vm712, %v711, 0
        %719 = vmatprep.subr.bf16.mxu0 0
        %720 = vmatpush1.bf16.xpose.msra.mxu0 %v717
        %721 = vmatprep.subr.bf16.mxu0 0
        %722 = vmatpush1.bf16.xpose.msra.mxu0 0
        %723 = vmatprep.subr.bf16.mxu0 0
        %724 = vmatpush1.bf16.xpose.msra.mxu0 0
        %725 = vmatprep.subr.bf16.mxu0 0
        %726 = vmatpush1.bf16.xpose.msra.mxu0 0
        %727 = vmatprep.subr.bf16.mxu0 0
        %728 = vmatpush1.bf16.xpose.msra.mxu0 0
        %729 = vmatprep.subr.bf16.mxu0 0
        %730 = vmatpush1.bf16.xpose.msra.mxu0 0
        %731 = vmatprep.subr.bf16.mxu0 0
        %732 = vmatpush1.bf16.xpose.msra.mxu0 0
        %733 = vmatprep.subr.bf16.mxu0 0
        %734 = vmatpush1.bf16.xpose.msra.mxu0 0
        %735 = vmatprep.subr.bf16.mxu0 0
        %736 = vmatpush1.bf16.xpose.msra.mxu0 0
        %737 = vmatprep.subr.bf16.mxu0 0
        %738 = vmatpush1.bf16.xpose.msra.mxu0 0
        %739 = vmatprep.subr.bf16.mxu0 0
        %740 = vmatpush1.bf16.xpose.msra.mxu0 0
        %741 = vmatprep.subr.bf16.mxu0 0
        %742 = vmatpush1.bf16.xpose.msra.mxu0 0
        %743 = vmatprep.subr.bf16.mxu0 0
        %744 = vmatpush1.bf16.xpose.msra.mxu0 0
        %745 = vmatprep.subr.bf16.mxu0 0
        %746 = vmatpush1.bf16.xpose.msra.mxu0 0
        %747 = vmatprep.subr.bf16.mxu0 0
        %748 = vmatpush1.bf16.xpose.msra.mxu0 0
        %749 = vmatprep.subr.bf16.mxu0 0
        %750 = vmatpush1.bf16.xpose.msra.mxu0 0
        %751 = vmatprep.mubr.bf16.mxu0 0
        %752 = vmatmul.mubr.bf16.gmra.mrb[0].mxu0 %v714
        %v753 = vpop.f32.mrb[0].mxu0
        %v754 = vadd.f32 0.0, %v753
        %v755 = vpop.f32.mrb[0].mxu0
        %v756 = vpop.f32.mrb[0].mxu0
        %v757 = vpop.f32.mrb[0].mxu0
        %758 = vdwg.mxu0
        %760 = vrot.lane.b32.xlu0 %v706, 96
        %v761 = vpop.permute.xlu0 %760
        %v763 = vsel %vm712, %v706, 0
        %v766 = vsel %vm712, %v761, 0
        %768 = vmatprep.subr.bf16.mxu0 0
        %769 = vmatpush1.bf16.xpose.msra.mxu0 %v766
        %770 = vmatprep.subr.bf16.mxu0 0
        %771 = vmatpush1.bf16.xpose.msra.mxu0 0
        %772 = vmatprep.subr.bf16.mxu0 0
        %773 = vmatpush1.bf16.xpose.msra.mxu0 0
        %774 = vmatprep.subr.bf16.mxu0 0
        %775 = vmatpush1.bf16.xpose.msra.mxu0 0
        %776 = vmatprep.subr.bf16.mxu0 0
        %777 = vmatpush1.bf16.xpose.msra.mxu0 0
        %778 = vmatprep.subr.bf16.mxu0 0
        %779 = vmatpush1.bf16.xpose.msra.mxu0 0
        %780 = vmatprep.subr.bf16.mxu0 0
        %781 = vmatpush1.bf16.xpose.msra.mxu0 0
        %782 = vmatprep.subr.bf16.mxu0 0
        %783 = vmatpush1.bf16.xpose.msra.mxu0 0
        %784 = vmatprep.subr.bf16.mxu0 0
        %785 = vmatpush1.bf16.xpose.msra.mxu0 0
        %786 = vmatprep.subr.bf16.mxu0 0
        %787 = vmatpush1.bf16.xpose.msra.mxu0 0
        %788 = vmatprep.subr.bf16.mxu0 0
        %789 = vmatpush1.bf16.xpose.msra.mxu0 0
        %790 = vmatprep.subr.bf16.mxu0 0
        %791 = vmatpush1.bf16.xpose.msra.mxu0 0
        %792 = vmatprep.subr.bf16.mxu0 0
        %793 = vmatpush1.bf16.xpose.msra.mxu0 0
        %794 = vmatprep.subr.bf16.mxu0 0
        %795 = vmatpush1.bf16.xpose.msra.mxu0 0
        %796 = vmatprep.subr.bf16.mxu0 0
        %797 = vmatpush1.bf16.xpose.msra.mxu0 0
        %798 = vmatprep.subr.bf16.mxu0 0
        %799 = vmatpush1.bf16.xpose.msra.mxu0 0
        %800 = vmatprep.mubr.bf16.mxu0 0
        %801 = vmatmul.mubr.bf16.gmra.mrb[0].mxu0 %v763
        %v802 = vpop.f32.mrb[0].mxu0
        %v803 = vadd.f32 0.0, %v802
        %v804 = vpop.f32.mrb[0].mxu0
        %v805 = vpop.f32.mrb[0].mxu0
        %v806 = vpop.f32.mrb[0].mxu0
        %807 = vdwg.mxu0
        %809 = vrot.lane.b32.xlu0 %v707, 96
        %v810 = vpop.permute.xlu0 %809
        %v812 = vsel %vm712, %v707, 0
        %v815 = vsel %vm712, %v810, 0
        %817 = vmatprep.subr.bf16.mxu0 0
        %818 = vmatpush1.bf16.xpose.msra.mxu0 %v815
        %819 = vmatprep.subr.bf16.mxu0 0
        %820 = vmatpush1.bf16.xpose.msra.mxu0 0
        %821 = vmatprep.subr.bf16.mxu0 0
        %822 = vmatpush1.bf16.xpose.msra.mxu0 0
        %823 = vmatprep.subr.bf16.mxu0 0
        %824 = vmatpush1.bf16.xpose.msra.mxu0 0
        %825 = vmatprep.subr.bf16.mxu0 0
        %826 = vmatpush1.bf16.xpose.msra.mxu0 0
        %827 = vmatprep.subr.bf16.mxu0 0
        %828 = vmatpush1.bf16.xpose.msra.mxu0 0
        %829 = vmatprep.subr.bf16.mxu0 0
        %830 = vmatpush1.bf16.xpose.msra.mxu0 0
        %831 = vmatprep.subr.bf16.mxu0 0
        %832 = vmatpush1.bf16.xpose.msra.mxu0 0
        %833 = vmatprep.subr.bf16.mxu0 0
        %834 = vmatpush1.bf16.xpose.msra.mxu0 0
        %835 = vmatprep.subr.bf16.mxu0 0
        %836 = vmatpush1.bf16.xpose.msra.mxu0 0
        %837 = vmatprep.subr.bf16.mxu0 0
        %838 = vmatpush1.bf16.xpose.msra.mxu0 0
        %839 = vmatprep.subr.bf16.mxu0 0
        %840 = vmatpush1.bf16.xpose.msra.mxu0 0
        %841 = vmatprep.subr.bf16.mxu0 0
        %842 = vmatpush1.bf16.xpose.msra.mxu0 0
        %843 = vmatprep.subr.bf16.mxu0 0
        %844 = vmatpush1.bf16.xpose.msra.mxu0 0
        %845 = vmatprep.subr.bf16.mxu0 0
        %846 = vmatpush1.bf16.xpose.msra.mxu0 0
        %847 = vmatprep.subr.bf16.mxu0 0
        %848 = vmatpush1.bf16.xpose.msra.mxu0 0
        %849 = vmatprep.mubr.bf16.mxu0 0
        %850 = vmatmul.mubr.bf16.gmra.mrb[0].mxu0 %v812
        %v851 = vpop.f32.mrb[0].mxu0
        %v852 = vadd.f32 0.0, %v851
        %v853 = vpop.f32.mrb[0].mxu0
        %v854 = vpop.f32.mrb[0].mxu0
        %v855 = vpop.f32.mrb[0].mxu0
        %856 = vdwg.mxu0
        %858 = vrot.lane.b32.xlu0 %v708, 96
        %v859 = vpop.permute.xlu0 %858
        %v861 = vsel %vm712, %v708, 0
        %v864 = vsel %vm712, %v859, 0
        %866 = vmatprep.subr.bf16.mxu0 0
        %867 = vmatpush1.bf16.xpose.msra.mxu0 %v864
        %868 = vmatprep.subr.bf16.mxu0 0
        %869 = vmatpush1.bf16.xpose.msra.mxu0 0
        %870 = vmatprep.subr.bf16.mxu0 0
        %871 = vmatpush1.bf16.xpose.msra.mxu0 0
        %872 = vmatprep.subr.bf16.mxu0 0
        %873 = vmatpush1.bf16.xpose.msra.mxu0 0
        %874 = vmatprep.subr.bf16.mxu0 0
        %875 = vmatpush1.bf16.xpose.msra.mxu0 0
        %876 = vmatprep.subr.bf16.mxu0 0
        %877 = vmatpush1.bf16.xpose.msra.mxu0 0
        %878 = vmatprep.subr.bf16.mxu0 0
        %879 = vmatpush1.bf16.xpose.msra.mxu0 0
        %880 = vmatprep.subr.bf16.mxu0 0
        %881 = vmatpush1.bf16.xpose.msra.mxu0 0
        %882 = vmatprep.subr.bf16.mxu0 0
        %883 = vmatpush1.bf16.xpose.msra.mxu0 0
        %884 = vmatprep.subr.bf16.mxu0 0
        %885 = vmatpush1.bf16.xpose.msra.mxu0 0
        %886 = vmatprep.subr.bf16.mxu0 0
        %887 = vmatpush1.bf16.xpose.msra.mxu0 0
        %888 = vmatprep.subr.bf16.mxu0 0
        %889 = vmatpush1.bf16.xpose.msra.mxu0 0
        %890 = vmatprep.subr.bf16.mxu0 0
        %891 = vmatpush1.bf16.xpose.msra.mxu0 0
        %892 = vmatprep.subr.bf16.mxu0 0
        %893 = vmatpush1.bf16.xpose.msra.mxu0 0
        %894 = vmatprep.subr.bf16.mxu0 0
        %895 = vmatpush1.bf16.xpose.msra.mxu0 0
        %896 = vmatprep.subr.bf16.mxu0 0
        %897 = vmatpush1.bf16.xpose.msra.mxu0 0
        %898 = vmatprep.mubr.bf16.mxu0 0
        %899 = vmatmul.mubr.bf16.gmra.mrb[0].mxu0 %v861
        %v900 = vpop.f32.mrb[0].mxu0
        %v901 = vadd.f32 0.0, %v900
        %v902 = vpop.f32.mrb[0].mxu0
        %v903 = vpop.f32.mrb[0].mxu0
        %v904 = vpop.f32.mrb[0].mxu0
        %905 = vdwg.mxu0
        %v906 = vmul.f32 %v754, 0.35355338
        %v907 = vmul.f32 %v803, 0.35355338
        %v908 = vmul.f32 %v852, 0.35355338
        %v909 = vmul.f32 %v901, 0.35355338
        %v910 = vsel %vm712, %v906, -inf
        %911 = vmax.xlane.f32.xlu0 %v910
        %v912 = vpop.xlane.xlu0 %911
        %v913 = vsel %vm712, %v907, -inf
        %914 = vmax.xlane.f32.xlu0 %v913
        %v915 = vpop.xlane.xlu0 %914
        %v916 = vsel %vm712, %v908, -inf
        %917 = vmax.xlane.f32.xlu0 %v916
        %v918 = vpop.xlane.xlu0 %917
        %v919 = vsel %vm712, %v909, -inf
        %920 = vmax.xlane.f32.xlu0 %v919
        %v921 = vpop.xlane.xlu0 %920
        %v922 = vsub.f32 %v906, %v912
        %v923 = vsub.f32 %v907, %v915
        %v924 = vsub.f32 %v908, %v918
        %v925 = vsub.f32 %v909, %v921
        %v926 = vmul.f32 %v922, 1.442695
        %v927 = vpow.pop %v926
        %v928 = vmul.f32 %v923, 1.442695
        %v929 = vpow.pop %v928
        %v930 = vmul.f32 %v924, 1.442695
        %v931 = vpow.pop %v930
        %v932 = vmul.f32 %v925, 1.442695
        %v933 = vpow.pop %v932
        %v934 = vsel %vm712, %v927, 0.0
        %935 = vadd.xlane.f32.xlu0 %v934
        %v936 = vpop.xlane.xlu0 %935
        %v937 = vsel %vm712, %v929, 0.0
        %938 = vadd.xlane.f32.xlu0 %v937
        %v939 = vpop.xlane.xlu0 %938
        %v940 = vsel %vm712, %v931, 0.0
        %941 = vadd.xlane.f32.xlu0 %v940
        %v942 = vpop.xlane.xlu0 %941
        %v943 = vsel %vm712, %v933, 0.0
        %944 = vadd.xlane.f32.xlu0 %v943
        %v945 = vpop.xlane.xlu0 %944
        %v946 = vrcp.pop %v936
        %v947 = vrcp.pop %v939
        %v948 = vrcp.pop %v942
        %v949 = vrcp.pop %v945
        %v950 = vmul.f32 %v927, %v946
        %v951 = vmul.f32 %v929, %v947
        %v952 = vmul.f32 %v931, %v948
        %v953 = vmul.f32 %v933, %v949
        %v954 = vpack.c.bf16 %v950, %v950
        %v955 = vpack.c.bf16 %v951, %v951
        %v956 = vpack.c.bf16 %v952, %v952
        %v957 = vpack.c.bf16 %v953, %v953
        %958 = vrot.lane.b32.xlu0 %v705, 64
        %v959 = vpop.permute.xlu0 %958
        %v961 = vsel %vm712, %v954, 0
        %vm963 = vcmask 1043456
        %v965 = vsel %vm963, %v959, 0
        %967 = vmatprep.subr.bf16.mxu0 0
        %968 = vmatpush1.bf16.msra.mxu0 %v965
        %969 = vmatprep.subr.bf16.mxu0 0
        %970 = vmatpush1.bf16.msra.mxu0 0
        %971 = vmatprep.subr.bf16.mxu0 0
        %972 = vmatpush1.bf16.msra.mxu0 0
        %973 = vmatprep.subr.bf16.mxu0 0
        %974 = vmatpush1.bf16.msra.mxu0 0
        %975 = vmatprep.subr.bf16.mxu0 0
        %976 = vmatpush1.bf16.msra.mxu0 0
        %977 = vmatprep.subr.bf16.mxu0 0
        %978 = vmatpush1.bf16.msra.mxu0 0
        %979 = vmatprep.subr.bf16.mxu0 0
        %980 = vmatpush1.bf16.msra.mxu0 0
        %981 = vmatprep.subr.bf16.mxu0 0
        %982 = vmatpush1.bf16.msra.mxu0 0
        %983 = vmatprep.subr.bf16.mxu0 0
        %984 = vmatpush1.bf16.msra.mxu0 0
        %985 = vmatprep.subr.bf16.mxu0 0
        %986 = vmatpush1.bf16.msra.mxu0 0
        %987 = vmatprep.subr.bf16.mxu0 0
        %988 = vmatpush1.bf16.msra.mxu0 0
        %989 = vmatprep.subr.bf16.mxu0 0
        %990 = vmatpush1.bf16.msra.mxu0 0
        %991 = vmatprep.subr.bf16.mxu0 0
        %992 = vmatpush1.bf16.msra.mxu0 0
        %993 = vmatprep.subr.bf16.mxu0 0
        %994 = vmatpush1.bf16.msra.mxu0 0
        %995 = vmatprep.subr.bf16.mxu0 0
        %996 = vmatpush1.bf16.msra.mxu0 0
        %997 = vmatprep.subr.bf16.mxu0 0
        %998 = vmatpush1.bf16.msra.mxu0 0
        %999 = vmatprep.mubr.bf16.mxu0 0
        %1000 = vmatmul.mubr.bf16.gmra.mrb[0].mxu0 %v961
        %v1001 = vpop.f32.mrb[0].mxu0
        %v1002 = vadd.f32 0.0, %v1001
        %v1003 = vpop.f32.mrb[0].mxu0
        %v1004 = vpop.f32.mrb[0].mxu0
        %v1005 = vpop.f32.mrb[0].mxu0
        %1006 = vdwg.mxu0
        %1007 = vrot.lane.b32.xlu0 %v706, 64
        %v1008 = vpop.permute.xlu0 %1007
        %v1010 = vsel %vm712, %v955, 0
        %v1013 = vsel %vm963, %v1008, 0
        %1015 = vmatprep.subr.bf16.mxu0 0
        %1016 = vmatpush1.bf16.msra.mxu0 %v1013
        %1017 = vmatprep.subr.bf16.mxu0 0
        %1018 = vmatpush1.bf16.msra.mxu0 0
        %1019 = vmatprep.subr.bf16.mxu0 0
        %1020 = vmatpush1.bf16.msra.mxu0 0
        %1021 = vmatprep.subr.bf16.mxu0 0
        %1022 = vmatpush1.bf16.msra.mxu0 0
        %1023 = vmatprep.subr.bf16.mxu0 0
        %1024 = vmatpush1.bf16.msra.mxu0 0
        %1025 = vmatprep.subr.bf16.mxu0 0
        %1026 = vmatpush1.bf16.msra.mxu0 0
        %1027 = vmatprep.subr.bf16.mxu0 0
        %1028 = vmatpush1.bf16.msra.mxu0 0
        %1029 = vmatprep.subr.bf16.mxu0 0
        %1030 = vmatpush1.bf16.msra.mxu0 0
        %1031 = vmatprep.subr.bf16.mxu0 0
        %1032 = vmatpush1.bf16.msra.mxu0 0
        %1033 = vmatprep.subr.bf16.mxu0 0
        %1034 = vmatpush1.bf16.msra.mxu0 0
        %1035 = vmatprep.subr.bf16.mxu0 0
        %1036 = vmatpush1.bf16.msra.mxu0 0
        %1037 = vmatprep.subr.bf16.mxu0 0
        %1038 = vmatpush1.bf16.msra.mxu0 0
        %1039 = vmatprep.subr.bf16.mxu0 0
        %1040 = vmatpush1.bf16.msra.mxu0 0
        %1041 = vmatprep.subr.bf16.mxu0 0
        %1042 = vmatpush1.bf16.msra.mxu0 0
        %1043 = vmatprep.subr.bf16.mxu0 0
        %1044 = vmatpush1.bf16.msra.mxu0 0
        %1045 = vmatprep.subr.bf16.mxu0 0
        %1046 = vmatpush1.bf16.msra.mxu0 0
        %1047 = vmatprep.mubr.bf16.mxu0 0
        %1048 = vmatmul.mubr.bf16.gmra.mrb[0].mxu0 %v1010
        %v1049 = vpop.f32.mrb[0].mxu0
        %v1050 = vadd.f32 0.0, %v1049
        %v1051 = vpop.f32.mrb[0].mxu0
        %v1052 = vpop.f32.mrb[0].mxu0
        %v1053 = vpop.f32.mrb[0].mxu0
        %1054 = vdwg.mxu0
        %1055 = vrot.lane.b32.xlu0 %v707, 64
        %v1056 = vpop.permute.xlu0 %1055
        %v1058 = vsel %vm712, %v956, 0
        %v1061 = vsel %vm963, %v1056, 0
        %1063 = vmatprep.subr.bf16.mxu0 0
        %1064 = vmatpush1.bf16.msra.mxu0 %v1061
        %1065 = vmatprep.subr.bf16.mxu0 0
        %1066 = vmatpush1.bf16.msra.mxu0 0
        %1067 = vmatprep.subr.bf16.mxu0 0
        %1068 = vmatpush1.bf16.msra.mxu0 0
        %1069 = vmatprep.subr.bf16.mxu0 0
        %1070 = vmatpush1.bf16.msra.mxu0 0
        %1071 = vmatprep.subr.bf16.mxu0 0
        %1072 = vmatpush1.bf16.msra.mxu0 0
        %1073 = vmatprep.subr.bf16.mxu0 0
        %1074 = vmatpush1.bf16.msra.mxu0 0
        %1075 = vmatprep.subr.bf16.mxu0 0
        %1076 = vmatpush1.bf16.msra.mxu0 0
        %1077 = vmatprep.subr.bf16.mxu0 0
        %1078 = vmatpush1.bf16.msra.mxu0 0
        %1079 = vmatprep.subr.bf16.mxu0 0
        %1080 = vmatpush1.bf16.msra.mxu0 0
        %1081 = vmatprep.subr.bf16.mxu0 0
        %1082 = vmatpush1.bf16.msra.mxu0 0
        %1083 = vmatprep.subr.bf16.mxu0 0
        %1084 = vmatpush1.bf16.msra.mxu0 0
        %1085 = vmatprep.subr.bf16.mxu0 0
        %1086 = vmatpush1.bf16.msra.mxu0 0
        %1087 = vmatprep.subr.bf16.mxu0 0
        %1088 = vmatpush1.bf16.msra.mxu0 0
        %1089 = vmatprep.subr.bf16.mxu0 0
        %1090 = vmatpush1.bf16.msra.mxu0 0
        %1091 = vmatprep.subr.bf16.mxu0 0
        %1092 = vmatpush1.bf16.msra.mxu0 0
        %1093 = vmatprep.subr.bf16.mxu0 0
        %1094 = vmatpush1.bf16.msra.mxu0 0
        %1095 = vmatprep.mubr.bf16.mxu0 0
        %1096 = vmatmul.mubr.bf16.gmra.mrb[0].mxu0 %v1058
        %v1097 = vpop.f32.mrb[0].mxu0
        %v1098 = vadd.f32 0.0, %v1097
        %v1099 = vpop.f32.mrb[0].mxu0
        %v1100 = vpop.f32.mrb[0].mxu0
        %v1101 = vpop.f32.mrb[0].mxu0
        %1102 = vdwg.mxu0
        %1103 = vrot.lane.b32.xlu0 %v708, 64
        %v1104 = vpop.permute.xlu0 %1103
        %v1106 = vsel %vm712, %v957, 0
        %v1109 = vsel %vm963, %v1104, 0
        %1111 = vmatprep.subr.bf16.mxu0 0
        %1112 = vmatpush1.bf16.msra.mxu0 %v1109
        %1113 = vmatprep.subr.bf16.mxu0 0
        %1114 = vmatpush1.bf16.msra.mxu0 0
        %1115 = vmatprep.subr.bf16.mxu0 0
        %1116 = vmatpush1.bf16.msra.mxu0 0
        %1117 = vmatprep.subr.bf16.mxu0 0
        %1118 = vmatpush1.bf16.msra.mxu0 0
        %1119 = vmatprep.subr.bf16.mxu0 0
        %1120 = vmatpush1.bf16.msra.mxu0 0
        %1121 = vmatprep.subr.bf16.mxu0 0
        %1122 = vmatpush1.bf16.msra.mxu0 0
        %1123 = vmatprep.subr.bf16.mxu0 0
        %1124 = vmatpush1.bf16.msra.mxu0 0
        %1125 = vmatprep.subr.bf16.mxu0 0
        %1126 = vmatpush1.bf16.msra.mxu0 0
        %1127 = vmatprep.subr.bf16.mxu0 0
        %1128 = vmatpush1.bf16.msra.mxu0 0
        %1129 = vmatprep.subr.bf16.mxu0 0
        %1130 = vmatpush1.bf16.msra.mxu0 0
        %1131 = vmatprep.subr.bf16.mxu0 0
        %1132 = vmatpush1.bf16.msra.mxu0 0
        %1133 = vmatprep.subr.bf16.mxu0 0
        %1134 = vmatpush1.bf16.msra.mxu0 0
        %1135 = vmatprep.subr.bf16.mxu0 0
        %1136 = vmatpush1.bf16.msra.mxu0 0
        %1137 = vmatprep.subr.bf16.mxu0 0
        %1138 = vmatpush1.bf16.msra.mxu0 0
        %1139 = vmatprep.subr.bf16.mxu0 0
        %1140 = vmatpush1.bf16.msra.mxu0 0
        %1141 = vmatprep.subr.bf16.mxu0 0
        %1142 = vmatpush1.bf16.msra.mxu0 0
        %1143 = vmatprep.mubr.bf16.mxu0 0
        %1144 = vmatmul.mubr.bf16.gmra.mrb[0].mxu0 %v1106
        %v1145 = vpop.f32.mrb[0].mxu0
        %v1146 = vadd.f32 0.0, %v1145
        %v1147 = vpop.f32.mrb[0].mxu0
        %v1148 = vpop.f32.mrb[0].mxu0
        %v1149 = vpop.f32.mrb[0].mxu0
        %1150 = vdwg.mxu0
        %v1151 = vpack.c.bf16 %v1002, %v1002
        %v1152 = vpack.c.bf16 %v1050, %v1050
        %v1153 = vpack.c.bf16 %v1098, %v1098
        %v1154 = vpack.c.bf16 %v1146, %v1146
        %v1156 = vsel %vm712, %v1151, 0
        %v1159 = vsel %vm963, %v691, 0
        %1161 = vmatprep.subr.bf16.mxu0 0
        %1162 = vmatpush1.bf16.msra.mxu0 %v1159
        %1163 = vmatprep.subr.bf16.mxu0 0
        %1164 = vmatpush1.bf16.msra.mxu0 0
        %1165 = vmatprep.subr.bf16.mxu0 0
        %1166 = vmatpush1.bf16.msra.mxu0 0
        %1167 = vmatprep.subr.bf16.mxu0 0
        %1168 = vmatpush1.bf16.msra.mxu0 0
        %1169 = vmatprep.subr.bf16.mxu0 0
        %1170 = vmatpush1.bf16.msra.mxu0 0
        %1171 = vmatprep.subr.bf16.mxu0 0
        %1172 = vmatpush1.bf16.msra.mxu0 0
        %1173 = vmatprep.subr.bf16.mxu0 0
        %1174 = vmatpush1.bf16.msra.mxu0 0
        %1175 = vmatprep.subr.bf16.mxu0 0
        %1176 = vmatpush1.bf16.msra.mxu0 0
        %1177 = vmatprep.subr.bf16.mxu0 0
        %1178 = vmatpush1.bf16.msra.mxu0 0
        %1179 = vmatprep.subr.bf16.mxu0 0
        %1180 = vmatpush1.bf16.msra.mxu0 0
        %1181 = vmatprep.subr.bf16.mxu0 0
        %1182 = vmatpush1.bf16.msra.mxu0 0
        %1183 = vmatprep.subr.bf16.mxu0 0
        %1184 = vmatpush1.bf16.msra.mxu0 0
        %1185 = vmatprep.subr.bf16.mxu0 0
        %1186 = vmatpush1.bf16.msra.mxu0 0
        %1187 = vmatprep.subr.bf16.mxu0 0
        %1188 = vmatpush1.bf16.msra.mxu0 0
        %1189 = vmatprep.subr.bf16.mxu0 0
        %1190 = vmatpush1.bf16.msra.mxu0 0
        %1191 = vmatprep.subr.bf16.mxu0 0
        %1192 = vmatpush1.bf16.msra.mxu0 0
        %1193 = vmatprep.mubr.bf16.mxu0 0
        %1194 = vmatmul.mubr.bf16.gmra.mrb[0].mxu0 %v1156
        %v1195 = vpop.f32.mrb[0].mxu0
        %v1196 = vadd.f32 0.0, %v1195
        %v1197 = vpop.f32.mrb[0].mxu0
        %v1198 = vpop.f32.mrb[0].mxu0
        %v1199 = vpop.f32.mrb[0].mxu0
        %1200 = vdwg.mxu0
        %v1202 = vsel %vm712, %v1152, 0
        %v1205 = vsel %vm963, %v692, 0
        %1207 = vmatprep.subr.bf16.mxu0 0
        %1208 = vmatpush1.bf16.msra.mxu0 %v1205
        %1209 = vmatprep.subr.bf16.mxu0 0
        %1210 = vmatpush1.bf16.msra.mxu0 0
        %1211 = vmatprep.subr.bf16.mxu0 0
        %1212 = vmatpush1.bf16.msra.mxu0 0
        %1213 = vmatprep.subr.bf16.mxu0 0
        %1214 = vmatpush1.bf16.msra.mxu0 0
        %1215 = vmatprep.subr.bf16.mxu0 0
        %1216 = vmatpush1.bf16.msra.mxu0 0
        %1217 = vmatprep.subr.bf16.mxu0 0
        %1218 = vmatpush1.bf16.msra.mxu0 0
        %1219 = vmatprep.subr.bf16.mxu0 0
        %1220 = vmatpush1.bf16.msra.mxu0 0
        %1221 = vmatprep.subr.bf16.mxu0 0
        %1222 = vmatpush1.bf16.msra.mxu0 0
        %1223 = vmatprep.subr.bf16.mxu0 0
        %1224 = vmatpush1.bf16.msra.mxu0 0
        %1225 = vmatprep.subr.bf16.mxu0 0
        %1226 = vmatpush1.bf16.msra.mxu0 0
        %1227 = vmatprep.subr.bf16.mxu0 0
        %1228 = vmatpush1.bf16.msra.mxu0 0
        %1229 = vmatprep.subr.bf16.mxu0 0
        %1230 = vmatpush1.bf16.msra.mxu0 0
        %1231 = vmatprep.subr.bf16.mxu0 0
        %1232 = vmatpush1.bf16.msra.mxu0 0
        %1233 = vmatprep.subr.bf16.mxu0 0
        %1234 = vmatpush1.bf16.msra.mxu0 0
        %1235 = vmatprep.subr.bf16.mxu0 0
        %1236 = vmatpush1.bf16.msra.mxu0 0
        %1237 = vmatprep.subr.bf16.mxu0 0
        %1238 = vmatpush1.bf16.msra.mxu0 0
        %1239 = vmatprep.mubr.bf16.mxu0 0
        %1240 = vmatmul.mubr.bf16.gmra.mrb[0].mxu0 %v1202
        %v1241 = vpop.f32.mrb[0].mxu0
        %v1242 = vadd.f32 0.0, %v1241
        %v1243 = vpop.f32.mrb[0].mxu0
        %v1244 = vpop.f32.mrb[0].mxu0
        %v1245 = vpop.f32.mrb[0].mxu0
        %1246 = vdwg.mxu0
        %v1248 = vsel %vm712, %v1153, 0
        %v1251 = vsel %vm963, %v693, 0
        %1253 = vmatprep.subr.bf16.mxu0 0
        %1254 = vmatpush1.bf16.msra.mxu0 %v1251
        %1255 = vmatprep.subr.bf16.mxu0 0
        %1256 = vmatpush1.bf16.msra.mxu0 0
        %1257 = vmatprep.subr.bf16.mxu0 0
        %1258 = vmatpush1.bf16.msra.mxu0 0
        %1259 = vmatprep.subr.bf16.mxu0 0
        %1260 = vmatpush1.bf16.msra.mxu0 0
        %1261 = vmatprep.subr.bf16.mxu0 0
        %1262 = vmatpush1.bf16.msra.mxu0 0
        %1263 = vmatprep.subr.bf16.mxu0 0
        %1264 = vmatpush1.bf16.msra.mxu0 0
        %1265 = vmatprep.subr.bf16.mxu0 0
        %1266 = vmatpush1.bf16.msra.mxu0 0
        %1267 = vmatprep.subr.bf16.mxu0 0
        %1268 = vmatpush1.bf16.msra.mxu0 0
        %1269 = vmatprep.subr.bf16.mxu0 0
        %1270 = vmatpush1.bf16.msra.mxu0 0
        %1271 = vmatprep.subr.bf16.mxu0 0
        %1272 = vmatpush1.bf16.msra.mxu0 0
        %1273 = vmatprep.subr.bf16.mxu0 0
        %1274 = vmatpush1.bf16.msra.mxu0 0
        %1275 = vmatprep.subr.bf16.mxu0 0
        %1276 = vmatpush1.bf16.msra.mxu0 0
        %1277 = vmatprep.subr.bf16.mxu0 0
        %1278 = vmatpush1.bf16.msra.mxu0 0
        %1279 = vmatprep.subr.bf16.mxu0 0
        %1280 = vmatpush1.bf16.msra.mxu0 0
        %1281 = vmatprep.subr.bf16.mxu0 0
        %1282 = vmatpush1.bf16.msra.mxu0 0
        %1283 = vmatprep.subr.bf16.mxu0 0
        %1284 = vmatpush1.bf16.msra.mxu0 0
        %1285 = vmatprep.mubr.bf16.mxu0 0
        %1286 = vmatmul.mubr.bf16.gmra.mrb[0].mxu0 %v1248
        %v1287 = vpop.f32.mrb[0].mxu0
        %v1288 = vadd.f32 0.0, %v1287
        %v1289 = vpop.f32.mrb[0].mxu0
        %v1290 = vpop.f32.mrb[0].mxu0
        %v1291 = vpop.f32.mrb[0].mxu0
        %1292 = vdwg.mxu0
        %v1294 = vsel %vm712, %v1154, 0
        %v1297 = vsel %vm963, %v694, 0
        %1299 = vmatprep.subr.bf16.mxu0 0
        %1300 = vmatpush1.bf16.msra.mxu0 %v1297
        %1301 = vmatprep.subr.bf16.mxu0 0
        %1302 = vmatpush1.bf16.msra.mxu0 0
        %1303 = vmatprep.subr.bf16.mxu0 0
        %1304 = vmatpush1.bf16.msra.mxu0 0
        %1305 = vmatprep.subr.bf16.mxu0 0
        %1306 = vmatpush1.bf16.msra.mxu0 0
        %1307 = vmatprep.subr.bf16.mxu0 0
        %1308 = vmatpush1.bf16.msra.mxu0 0
        %1309 = vmatprep.subr.bf16.mxu0 0
        %1310 = vmatpush1.bf16.msra.mxu0 0
        %1311 = vmatprep.subr.bf16.mxu0 0
        %1312 = vmatpush1.bf16.msra.mxu0 0
        %1313 = vmatprep.subr.bf16.mxu0 0
        %1314 = vmatpush1.bf16.msra.mxu0 0
        %1315 = vmatprep.subr.bf16.mxu0 0
        %1316 = vmatpush1.bf16.msra.mxu0 0
        %1317 = vmatprep.subr.bf16.mxu0 0
        %1318 = vmatpush1.bf16.msra.mxu0 0
        %1319 = vmatprep.subr.bf16.mxu0 0
        %1320 = vmatpush1.bf16.msra.mxu0 0
        %1321 = vmatprep.subr.bf16.mxu0 0
        %1322 = vmatpush1.bf16.msra.mxu0 0
        %1323 = vmatprep.subr.bf16.mxu0 0
        %1324 = vmatpush1.bf16.msra.mxu0 0
        %1325 = vmatprep.subr.bf16.mxu0 0
        %1326 = vmatpush1.bf16.msra.mxu0 0
        %1327 = vmatprep.subr.bf16.mxu0 0
        %1328 = vmatpush1.bf16.msra.mxu0 0
        %1329 = vmatprep.subr.bf16.mxu0 0
        %1330 = vmatpush1.bf16.msra.mxu0 0
        %1331 = vmatprep.mubr.bf16.mxu0 0
        %1332 = vmatmul.mubr.bf16.gmra.mrb[0].mxu0 %v1294
        %v1333 = vpop.f32.mrb[0].mxu0
        %v1334 = vadd.f32 0.0, %v1333
        %v1335 = vpop.f32.mrb[0].mxu0
        %v1336 = vpop.f32.mrb[0].mxu0
        %v1337 = vpop.f32.mrb[0].mxu0
        %1338 = vdwg.mxu0
        %v1339 = vsel %vm583, %v1196, 0.0
        %v1340 = vsel %vm583, %v1242, 0.0
        %v1341 = vadd.f32 %v1339, %v1340
        %v1342 = vsel %vm583, %v1288, 0.0
        %v1343 = vadd.f32 %v1341, %v1342
        %v1344 = vsel %vm583, %v1334, 0.0
        %v1345 = vadd.f32 %v1343, %v1344
        %1347 = vrot.lane.b32.xlu0 %v688, 120
        %v1348 = vpop.permute.xlu0 %1347
        %1350 = vrot.lane.b32.xlu0 %v688, 112
        %v1351 = vpop.permute.xlu0 %1350
        %1353 = vrot.lane.b32.xlu0 %v688, 104
        %v1354 = vpop.permute.xlu0 %1353
        %v1356 = vpack.c.bf16 %v688, %v688
        %v1357 = vpack.c.bf16 %v1348, %v1348
        %v1358 = vpack.c.bf16 %v1351, %v1351
        %v1359 = vpack.c.bf16 %v1354, %v1354
        %1361 = vrot.lane.b32.xlu0 %v1356, 96
        %v1362 = vpop.permute.xlu0 %1361
        %v1364 = vsel %vm712, %v1356, 0
        %v1367 = vsel %vm712, %v1362, 0
        %1369 = vmatprep.subr.bf16.mxu0 0
        %1370 = vmatpush1.bf16.xpose.msra.mxu0 %v1367
        %1371 = vmatprep.subr.bf16.mxu0 0
        %1372 = vmatpush1.bf16.xpose.msra.mxu0 0
        %1373 = vmatprep.subr.bf16.mxu0 0
        %1374 = vmatpush1.bf16.xpose.msra.mxu0 0
        %1375 = vmatprep.subr.bf16.mxu0 0
        %1376 = vmatpush1.bf16.xpose.msra.mxu0 0
        %1377 = vmatprep.subr.bf16.mxu0 0
        %1378 = vmatpush1.bf16.xpose.msra.mxu0 0
        %1379 = vmatprep.subr.bf16.mxu0 0
        %1380 = vmatpush1.bf16.xpose.msra.mxu0 0
        %1381 = vmatprep.subr.bf16.mxu0 0
        %1382 = vmatpush1.bf16.xpose.msra.mxu0 0
        %1383 = vmatprep.subr.bf16.mxu0 0
        %1384 = vmatpush1.bf16.xpose.msra.mxu0 0
        %1385 = vmatprep.subr.bf16.mxu0 0
        %1386 = vmatpush1.bf16.xpose.msra.mxu0 0
        %1387 = vmatprep.subr.bf16.mxu0 0
        %1388 = vmatpush1.bf16.xpose.msra.mxu0 0
        %1389 = vmatprep.subr.bf16.mxu0 0
        %1390 = vmatpush1.bf16.xpose.msra.mxu0 0
        %1391 = vmatprep.subr.bf16.mxu0 0
        %1392 = vmatpush1.bf16.xpose.msra.mxu0 0
        %1393 = vmatprep.subr.bf16.mxu0 0
        %1394 = vmatpush1.bf16.xpose.msra.mxu0 0
        %1395 = vmatprep.subr.bf16.mxu0 0
        %1396 = vmatpush1.bf16.xpose.msra.mxu0 0
        %1397 = vmatprep.subr.bf16.mxu0 0
        %1398 = vmatpush1.bf16.xpose.msra.mxu0 0
        %1399 = vmatprep.subr.bf16.mxu0 0
        %1400 = vmatpush1.bf16.xpose.msra.mxu0 0
        %1401 = vmatprep.mubr.bf16.mxu0 0
        %1402 = vmatmul.mubr.bf16.gmra.mrb[0].mxu0 %v1364
        %v1403 = vpop.f32.mrb[0].mxu0
        %v1404 = vadd.f32 0.0, %v1403
        %v1405 = vpop.f32.mrb[0].mxu0
        %v1406 = vpop.f32.mrb[0].mxu0
        %v1407 = vpop.f32.mrb[0].mxu0
        %1408 = vdwg.mxu0
        %1410 = vrot.lane.b32.xlu0 %v1357, 96
        %v1411 = vpop.permute.xlu0 %1410
        %v1413 = vsel %vm712, %v1357, 0
        %v1416 = vsel %vm712, %v1411, 0
        %1418 = vmatprep.subr.bf16.mxu0 0
        %1419 = vmatpush1.bf16.xpose.msra.mxu0 %v1416
        %1420 = vmatprep.subr.bf16.mxu0 0
        %1421 = vmatpush1.bf16.xpose.msra.mxu0 0
        %1422 = vmatprep.subr.bf16.mxu0 0
        %1423 = vmatpush1.bf16.xpose.msra.mxu0 0
        %1424 = vmatprep.subr.bf16.mxu0 0
        %1425 = vmatpush1.bf16.xpose.msra.mxu0 0
        %1426 = vmatprep.subr.bf16.mxu0 0
        %1427 = vmatpush1.bf16.xpose.msra.mxu0 0
        %1428 = vmatprep.subr.bf16.mxu0 0
        %1429 = vmatpush1.bf16.xpose.msra.mxu0 0
        %1430 = vmatprep.subr.bf16.mxu0 0
        %1431 = vmatpush1.bf16.xpose.msra.mxu0 0
        %1432 = vmatprep.subr.bf16.mxu0 0
        %1433 = vmatpush1.bf16.xpose.msra.mxu0 0
        %1434 = vmatprep.subr.bf16.mxu0 0
        %1435 = vmatpush1.bf16.xpose.msra.mxu0 0
        %1436 = vmatprep.subr.bf16.mxu0 0
        %1437 = vmatpush1.bf16.xpose.msra.mxu0 0
        %1438 = vmatprep.subr.bf16.mxu0 0
        %1439 = vmatpush1.bf16.xpose.msra.mxu0 0
        %1440 = vmatprep.subr.bf16.mxu0 0
        %1441 = vmatpush1.bf16.xpose.msra.mxu0 0
        %1442 = vmatprep.subr.bf16.mxu0 0
        %1443 = vmatpush1.bf16.xpose.msra.mxu0 0
        %1444 = vmatprep.subr.bf16.mxu0 0
        %1445 = vmatpush1.bf16.xpose.msra.mxu0 0
        %1446 = vmatprep.subr.bf16.mxu0 0
        %1447 = vmatpush1.bf16.xpose.msra.mxu0 0
        %1448 = vmatprep.subr.bf16.mxu0 0
        %1449 = vmatpush1.bf16.xpose.msra.mxu0 0
        %1450 = vmatprep.mubr.bf16.mxu0 0
        %1451 = vmatmul.mubr.bf16.gmra.mrb[0].mxu0 %v1413
        %v1452 = vpop.f32.mrb[0].mxu0
        %v1453 = vadd.f32 0.0, %v1452
        %v1454 = vpop.f32.mrb[0].mxu0
        %v1455 = vpop.f32.mrb[0].mxu0
        %v1456 = vpop.f32.mrb[0].mxu0
        %1457 = vdwg.mxu0
        %1459 = vrot.lane.b32.xlu0 %v1358, 96
        %v1460 = vpop.permute.xlu0 %1459
        %v1462 = vsel %vm712, %v1358, 0
        %v1465 = vsel %vm712, %v1460, 0
        %1467 = vmatprep.subr.bf16.mxu0 0
        %1468 = vmatpush1.bf16.xpose.msra.mxu0 %v1465
        %1469 = vmatprep.subr.bf16.mxu0 0
        %1470 = vmatpush1.bf16.xpose.msra.mxu0 0
        %1471 = vmatprep.subr.bf16.mxu0 0
        %1472 = vmatpush1.bf16.xpose.msra.mxu0 0
        %1473 = vmatprep.subr.bf16.mxu0 0
        %1474 = vmatpush1.bf16.xpose.msra.mxu0 0
        %1475 = vmatprep.subr.bf16.mxu0 0
        %1476 = vmatpush1.bf16.xpose.msra.mxu0 0
        %1477 = vmatprep.subr.bf16.mxu0 0
        %1478 = vmatpush1.bf16.xpose.msra.mxu0 0
        %1479 = vmatprep.subr.bf16.mxu0 0
        %1480 = vmatpush1.bf16.xpose.msra.mxu0 0
        %1481 = vmatprep.subr.bf16.mxu0 0
        %1482 = vmatpush1.bf16.xpose.msra.mxu0 0
        %1483 = vmatprep.subr.bf16.mxu0 0
        %1484 = vmatpush1.bf16.xpose.msra.mxu0 0
        %1485 = vmatprep.subr.bf16.mxu0 0
        %1486 = vmatpush1.bf16.xpose.msra.mxu0 0
        %1487 = vmatprep.subr.bf16.mxu0 0
        %1488 = vmatpush1.bf16.xpose.msra.mxu0 0
        %1489 = vmatprep.subr.bf16.mxu0 0
        %1490 = vmatpush1.bf16.xpose.msra.mxu0 0
        %1491 = vmatprep.subr.bf16.mxu0 0
        %1492 = vmatpush1.bf16.xpose.msra.mxu0 0
        %1493 = vmatprep.subr.bf16.mxu0 0
        %1494 = vmatpush1.bf16.xpose.msra.mxu0 0
        %1495 = vmatprep.subr.bf16.mxu0 0
        %1496 = vmatpush1.bf16.xpose.msra.mxu0 0
        %1497 = vmatprep.subr.bf16.mxu0 0
        %1498 = vmatpush1.bf16.xpose.msra.mxu0 0
        %1499 = vmatprep.mubr.bf16.mxu0 0
        %1500 = vmatmul.mubr.bf16.gmra.mrb[0].mxu0 %v1462
        %v1501 = vpop.f32.mrb[0].mxu0
        %v1502 = vadd.f32 0.0, %v1501
        %v1503 = vpop.f32.mrb[0].mxu0
        %v1504 = vpop.f32.mrb[0].mxu0
        %v1505 = vpop.f32.mrb[0].mxu0
        %1506 = vdwg.mxu0
        %1508 = vrot.lane.b32.xlu0 %v1359, 96
        %v1509 = vpop.permute.xlu0 %1508
        %v1511 = vsel %vm712, %v1359, 0
        %v1514 = vsel %vm712, %v1509, 0
        %1516 = vmatprep.subr.bf16.mxu0 0
        %1517 = vmatpush1.bf16.xpose.msra.mxu0 %v1514
        %1518 = vmatprep.subr.bf16.mxu0 0
        %1519 = vmatpush1.bf16.xpose.msra.mxu0 0
        %1520 = vmatprep.subr.bf16.mxu0 0
        %1521 = vmatpush1.bf16.xpose.msra.mxu0 0
        %1522 = vmatprep.subr.bf16.mxu0 0
        %1523 = vmatpush1.bf16.xpose.msra.mxu0 0
        %1524 = vmatprep.subr.bf16.mxu0 0
        %1525 = vmatpush1.bf16.xpose.msra.mxu0 0
        %1526 = vmatprep.subr.bf16.mxu0 0
        %1527 = vmatpush1.bf16.xpose.msra.mxu0 0
        %1528 = vmatprep.subr.bf16.mxu0 0
        %1529 = vmatpush1.bf16.xpose.msra.mxu0 0
        %1530 = vmatprep.subr.bf16.mxu0 0
        %1531 = vmatpush1.bf16.xpose.msra.mxu0 0
        %1532 = vmatprep.subr.bf16.mxu0 0
        %1533 = vmatpush1.bf16.xpose.msra.mxu0 0
        %1534 = vmatprep.subr.bf16.mxu0 0
        %1535 = vmatpush1.bf16.xpose.msra.mxu0 0
        %1536 = vmatprep.subr.bf16.mxu0 0
        %1537 = vmatpush1.bf16.xpose.msra.mxu0 0
        %1538 = vmatprep.subr.bf16.mxu0 0
        %1539 = vmatpush1.bf16.xpose.msra.mxu0 0
        %1540 = vmatprep.subr.bf16.mxu0 0
        %1541 = vmatpush1.bf16.xpose.msra.mxu0 0
        %1542 = vmatprep.subr.bf16.mxu0 0
        %1543 = vmatpush1.bf16.xpose.msra.mxu0 0
        %1544 = vmatprep.subr.bf16.mxu0 0
        %1545 = vmatpush1.bf16.xpose.msra.mxu0 0
        %1546 = vmatprep.subr.bf16.mxu0 0
        %1547 = vmatpush1.bf16.xpose.msra.mxu0 0
        %1548 = vmatprep.mubr.bf16.mxu0 0
        %1549 = vmatmul.mubr.bf16.gmra.mrb[0].mxu0 %v1511
        %v1550 = vpop.f32.mrb[0].mxu0
        %v1551 = vadd.f32 0.0, %v1550
        %v1552 = vpop.f32.mrb[0].mxu0
        %v1553 = vpop.f32.mrb[0].mxu0
        %v1554 = vpop.f32.mrb[0].mxu0
        %1555 = vdwg.mxu0
        %v1556 = vmul.f32 %v1404, 0.35355338
        %v1557 = vmul.f32 %v1453, 0.35355338
        %v1558 = vmul.f32 %v1502, 0.35355338
        %v1559 = vmul.f32 %v1551, 0.35355338
        %v1560 = vsel %vm712, %v1556, -inf
        %1561 = vmax.xlane.f32.xlu0 %v1560
        %v1562 = vpop.xlane.xlu0 %1561
        %v1563 = vsel %vm712, %v1557, -inf
        %1564 = vmax.xlane.f32.xlu0 %v1563
        %v1565 = vpop.xlane.xlu0 %1564
        %v1566 = vsel %vm712, %v1558, -inf
        %1567 = vmax.xlane.f32.xlu0 %v1566
        %v1568 = vpop.xlane.xlu0 %1567
        %v1569 = vsel %vm712, %v1559, -inf
        %1570 = vmax.xlane.f32.xlu0 %v1569
        %v1571 = vpop.xlane.xlu0 %1570
        %v1572 = vsub.f32 %v1556, %v1562
        %v1573 = vsub.f32 %v1557, %v1565
        %v1574 = vsub.f32 %v1558, %v1568
        %v1575 = vsub.f32 %v1559, %v1571
        %v1576 = vmul.f32 %v1572, 1.442695
        %v1577 = vpow.pop %v1576
        %v1578 = vmul.f32 %v1573, 1.442695
        %v1579 = vpow.pop %v1578
        %v1580 = vmul.f32 %v1574, 1.442695
        %v1581 = vpow.pop %v1580
        %v1582 = vmul.f32 %v1575, 1.442695
        %v1583 = vpow.pop %v1582
        %v1584 = vsel %vm712, %v1577, 0.0
        %1585 = vadd.xlane.f32.xlu0 %v1584
        %v1586 = vpop.xlane.xlu0 %1585
        %v1587 = vsel %vm712, %v1579, 0.0
        %1588 = vadd.xlane.f32.xlu0 %v1587
        %v1589 = vpop.xlane.xlu0 %1588
        %v1590 = vsel %vm712, %v1581, 0.0
        %1591 = vadd.xlane.f32.xlu0 %v1590
        %v1592 = vpop.xlane.xlu0 %1591
        %v1593 = vsel %vm712, %v1583, 0.0
        %1594 = vadd.xlane.f32.xlu0 %v1593
        %v1595 = vpop.xlane.xlu0 %1594
        %v1596 = vrcp.pop %v1586
        %v1597 = vrcp.pop %v1589
        %v1598 = vrcp.pop %v1592
        %v1599 = vrcp.pop %v1595
        %v1600 = vmul.f32 %v1577, %v1596
        %v1601 = vmul.f32 %v1579, %v1597
        %v1602 = vmul.f32 %v1581, %v1598
        %v1603 = vmul.f32 %v1583, %v1599
        %v1604 = vpack.c.bf16 %v1600, %v1600
        %v1605 = vpack.c.bf16 %v1601, %v1601
        %v1606 = vpack.c.bf16 %v1602, %v1602
        %v1607 = vpack.c.bf16 %v1603, %v1603
        %1608 = vrot.lane.b32.xlu0 %v1356, 64
        %v1609 = vpop.permute.xlu0 %1608
        %v1611 = vsel %vm712, %v1604, 0
        %v1614 = vsel %vm963, %v1609, 0
        %1616 = vmatprep.subr.bf16.mxu0 0
        %1617 = vmatpush1.bf16.msra.mxu0 %v1614
        %1618 = vmatprep.subr.bf16.mxu0 0
        %1619 = vmatpush1.bf16.msra.mxu0 0
        %1620 = vmatprep.subr.bf16.mxu0 0
        %1621 = vmatpush1.bf16.msra.mxu0 0
        %1622 = vmatprep.subr.bf16.mxu0 0
        %1623 = vmatpush1.bf16.msra.mxu0 0
        %1624 = vmatprep.subr.bf16.mxu0 0
        %1625 = vmatpush1.bf16.msra.mxu0 0
        %1626 = vmatprep.subr.bf16.mxu0 0
        %1627 = vmatpush1.bf16.msra.mxu0 0
        %1628 = vmatprep.subr.bf16.mxu0 0
        %1629 = vmatpush1.bf16.msra.mxu0 0
        %1630 = vmatprep.subr.bf16.mxu0 0
        %1631 = vmatpush1.bf16.msra.mxu0 0
        %1632 = vmatprep.subr.bf16.mxu0 0
        %1633 = vmatpush1.bf16.msra.mxu0 0
        %1634 = vmatprep.subr.bf16.mxu0 0
        %1635 = vmatpush1.bf16.msra.mxu0 0
        %1636 = vmatprep.subr.bf16.mxu0 0
        %1637 = vmatpush1.bf16.msra.mxu0 0
        %1638 = vmatprep.subr.bf16.mxu0 0
        %1639 = vmatpush1.bf16.msra.mxu0 0
        %1640 = vmatprep.subr.bf16.mxu0 0
        %1641 = vmatpush1.bf16.msra.mxu0 0
        %1642 = vmatprep.subr.bf16.mxu0 0
        %1643 = vmatpush1.bf16.msra.mxu0 0
        %1644 = vmatprep.subr.bf16.mxu0 0
        %1645 = vmatpush1.bf16.msra.mxu0 0
        %1646 = vmatprep.subr.bf16.mxu0 0
        %1647 = vmatpush1.bf16.msra.mxu0 0
        %1648 = vmatprep.mubr.bf16.mxu0 0
        %1649 = vmatmul.mubr.bf16.gmra.mrb[0].mxu0 %v1611
        %v1650 = vpop.f32.mrb[0].mxu0
        %v1651 = vadd.f32 0.0, %v1650
        %v1652 = vpop.f32.mrb[0].mxu0
        %v1653 = vpop.f32.mrb[0].mxu0
        %v1654 = vpop.f32.mrb[0].mxu0
        %1655 = vdwg.mxu0
        %1656 = vrot.lane.b32.xlu0 %v1357, 64
        %v1657 = vpop.permute.xlu0 %1656
        %v1659 = vsel %vm712, %v1605, 0
        %v1662 = vsel %vm963, %v1657, 0
        %1664 = vmatprep.subr.bf16.mxu0 0
        %1665 = vmatpush1.bf16.msra.mxu0 %v1662
        %1666 = vmatprep.subr.bf16.mxu0 0
        %1667 = vmatpush1.bf16.msra.mxu0 0
        %1668 = vmatprep.subr.bf16.mxu0 0
        %1669 = vmatpush1.bf16.msra.mxu0 0
        %1670 = vmatprep.subr.bf16.mxu0 0
        %1671 = vmatpush1.bf16.msra.mxu0 0
        %1672 = vmatprep.subr.bf16.mxu0 0
        %1673 = vmatpush1.bf16.msra.mxu0 0
        %1674 = vmatprep.subr.bf16.mxu0 0
        %1675 = vmatpush1.bf16.msra.mxu0 0
        %1676 = vmatprep.subr.bf16.mxu0 0
        %1677 = vmatpush1.bf16.msra.mxu0 0
        %1678 = vmatprep.subr.bf16.mxu0 0
        %1679 = vmatpush1.bf16.msra.mxu0 0
        %1680 = vmatprep.subr.bf16.mxu0 0
        %1681 = vmatpush1.bf16.msra.mxu0 0
        %1682 = vmatprep.subr.bf16.mxu0 0
        %1683 = vmatpush1.bf16.msra.mxu0 0
        %1684 = vmatprep.subr.bf16.mxu0 0
        %1685 = vmatpush1.bf16.msra.mxu0 0
        %1686 = vmatprep.subr.bf16.mxu0 0
        %1687 = vmatpush1.bf16.msra.mxu0 0
        %1688 = vmatprep.subr.bf16.mxu0 0
        %1689 = vmatpush1.bf16.msra.mxu0 0
        %1690 = vmatprep.subr.bf16.mxu0 0
        %1691 = vmatpush1.bf16.msra.mxu0 0
        %1692 = vmatprep.subr.bf16.mxu0 0
        %1693 = vmatpush1.bf16.msra.mxu0 0
        %1694 = vmatprep.subr.bf16.mxu0 0
        %1695 = vmatpush1.bf16.msra.mxu0 0
        %1696 = vmatprep.mubr.bf16.mxu0 0
        %1697 = vmatmul.mubr.bf16.gmra.mrb[0].mxu0 %v1659
        %v1698 = vpop.f32.mrb[0].mxu0
        %v1699 = vadd.f32 0.0, %v1698
        %v1700 = vpop.f32.mrb[0].mxu0
        %v1701 = vpop.f32.mrb[0].mxu0
        %v1702 = vpop.f32.mrb[0].mxu0
        %1703 = vdwg.mxu0
        %1704 = vrot.lane.b32.xlu0 %v1358, 64
        %v1705 = vpop.permute.xlu0 %1704
        %v1707 = vsel %vm712, %v1606, 0
        %v1710 = vsel %vm963, %v1705, 0
        %1712 = vmatprep.subr.bf16.mxu0 0
        %1713 = vmatpush1.bf16.msra.mxu0 %v1710
        %1714 = vmatprep.subr.bf16.mxu0 0
        %1715 = vmatpush1.bf16.msra.mxu0 0
        %1716 = vmatprep.subr.bf16.mxu0 0
        %1717 = vmatpush1.bf16.msra.mxu0 0
        %1718 = vmatprep.subr.bf16.mxu0 0
        %1719 = vmatpush1.bf16.msra.mxu0 0
        %1720 = vmatprep.subr.bf16.mxu0 0
        %1721 = vmatpush1.bf16.msra.mxu0 0
        %1722 = vmatprep.subr.bf16.mxu0 0
        %1723 = vmatpush1.bf16.msra.mxu0 0
        %1724 = vmatprep.subr.bf16.mxu0 0
        %1725 = vmatpush1.bf16.msra.mxu0 0
        %1726 = vmatprep.subr.bf16.mxu0 0
        %1727 = vmatpush1.bf16.msra.mxu0 0
        %1728 = vmatprep.subr.bf16.mxu0 0
        %1729 = vmatpush1.bf16.msra.mxu0 0
        %1730 = vmatprep.subr.bf16.mxu0 0
        %1731 = vmatpush1.bf16.msra.mxu0 0
        %1732 = vmatprep.subr.bf16.mxu0 0
        %1733 = vmatpush1.bf16.msra.mxu0 0
        %1734 = vmatprep.subr.bf16.mxu0 0
        %1735 = vmatpush1.bf16.msra.mxu0 0
        %1736 = vmatprep.subr.bf16.mxu0 0
        %1737 = vmatpush1.bf16.msra.mxu0 0
        %1738 = vmatprep.subr.bf16.mxu0 0
        %1739 = vmatpush1.bf16.msra.mxu0 0
        %1740 = vmatprep.subr.bf16.mxu0 0
        %1741 = vmatpush1.bf16.msra.mxu0 0
        %1742 = vmatprep.subr.bf16.mxu0 0
        %1743 = vmatpush1.bf16.msra.mxu0 0
        %1744 = vmatprep.mubr.bf16.mxu0 0
        %1745 = vmatmul.mubr.bf16.gmra.mrb[0].mxu0 %v1707
        %v1746 = vpop.f32.mrb[0].mxu0
        %v1747 = vadd.f32 0.0, %v1746
        %v1748 = vpop.f32.mrb[0].mxu0
        %v1749 = vpop.f32.mrb[0].mxu0
        %v1750 = vpop.f32.mrb[0].mxu0
        %1751 = vdwg.mxu0
        %1752 = vrot.lane.b32.xlu0 %v1359, 64
        %v1753 = vpop.permute.xlu0 %1752
        %v1755 = vsel %vm712, %v1607, 0
        %v1758 = vsel %vm963, %v1753, 0
        %1760 = vmatprep.subr.bf16.mxu0 0
        %1761 = vmatpush1.bf16.msra.mxu0 %v1758
        %1762 = vmatprep.subr.bf16.mxu0 0
        %1763 = vmatpush1.bf16.msra.mxu0 0
        %1764 = vmatprep.subr.bf16.mxu0 0
        %1765 = vmatpush1.bf16.msra.mxu0 0
        %1766 = vmatprep.subr.bf16.mxu0 0
        %1767 = vmatpush1.bf16.msra.mxu0 0
        %1768 = vmatprep.subr.bf16.mxu0 0
        %1769 = vmatpush1.bf16.msra.mxu0 0
        %1770 = vmatprep.subr.bf16.mxu0 0
        %1771 = vmatpush1.bf16.msra.mxu0 0
        %1772 = vmatprep.subr.bf16.mxu0 0
        %1773 = vmatpush1.bf16.msra.mxu0 0
        %1774 = vmatprep.subr.bf16.mxu0 0
        %1775 = vmatpush1.bf16.msra.mxu0 0
        %1776 = vmatprep.subr.bf16.mxu0 0
        %1777 = vmatpush1.bf16.msra.mxu0 0
        %1778 = vmatprep.subr.bf16.mxu0 0
        %1779 = vmatpush1.bf16.msra.mxu0 0
        %1780 = vmatprep.subr.bf16.mxu0 0
        %1781 = vmatpush1.bf16.msra.mxu0 0
        %1782 = vmatprep.subr.bf16.mxu0 0
        %1783 = vmatpush1.bf16.msra.mxu0 0
        %1784 = vmatprep.subr.bf16.mxu0 0
        %1785 = vmatpush1.bf16.msra.mxu0 0
        %1786 = vmatprep.subr.bf16.mxu0 0
        %1787 = vmatpush1.bf16.msra.mxu0 0
        %1788 = vmatprep.subr.bf16.mxu0 0
        %1789 = vmatpush1.bf16.msra.mxu0 0
        %1790 = vmatprep.subr.bf16.mxu0 0
        %1791 = vmatpush1.bf16.msra.mxu0 0
        %1792 = vmatprep.mubr.bf16.mxu0 0
        %1793 = vmatmul.mubr.bf16.gmra.mrb[0].mxu0 %v1755
        %v1794 = vpop.f32.mrb[0].mxu0
        %v1795 = vadd.f32 0.0, %v1794
        %v1796 = vpop.f32.mrb[0].mxu0
        %v1797 = vpop.f32.mrb[0].mxu0
        %v1798 = vpop.f32.mrb[0].mxu0
        %1799 = vdwg.mxu0
        %v1800 = vpack.c.bf16 %v1651, %v1651
        %v1801 = vpack.c.bf16 %v1699, %v1699
        %v1802 = vpack.c.bf16 %v1747, %v1747
        %v1803 = vpack.c.bf16 %v1795, %v1795
        %v1805 = vsel %vm712, %v1800, 0
        %1807 = vmatprep.subr.bf16.mxu0 0
        %1808 = vmatpush1.bf16.msra.mxu0 %v1159
        %1809 = vmatprep.subr.bf16.mxu0 0
        %1810 = vmatpush1.bf16.msra.mxu0 0
        %1811 = vmatprep.subr.bf16.mxu0 0
        %1812 = vmatpush1.bf16.msra.mxu0 0
        %1813 = vmatprep.subr.bf16.mxu0 0
        %1814 = vmatpush1.bf16.msra.mxu0 0
        %1815 = vmatprep.subr.bf16.mxu0 0
        %1816 = vmatpush1.bf16.msra.mxu0 0
        %1817 = vmatprep.subr.bf16.mxu0 0
        %1818 = vmatpush1.bf16.msra.mxu0 0
        %1819 = vmatprep.subr.bf16.mxu0 0
        %1820 = vmatpush1.bf16.msra.mxu0 0
        %1821 = vmatprep.subr.bf16.mxu0 0
        %1822 = vmatpush1.bf16.msra.mxu0 0
        %1823 = vmatprep.subr.bf16.mxu0 0
        %1824 = vmatpush1.bf16.msra.mxu0 0
        %1825 = vmatprep.subr.bf16.mxu0 0
        %1826 = vmatpush1.bf16.msra.mxu0 0
        %1827 = vmatprep.subr.bf16.mxu0 0
        %1828 = vmatpush1.bf16.msra.mxu0 0
        %1829 = vmatprep.subr.bf16.mxu0 0
        %1830 = vmatpush1.bf16.msra.mxu0 0
        %1831 = vmatprep.subr.bf16.mxu0 0
        %1832 = vmatpush1.bf16.msra.mxu0 0
        %1833 = vmatprep.subr.bf16.mxu0 0
        %1834 = vmatpush1.bf16.msra.mxu0 0
        %1835 = vmatprep.subr.bf16.mxu0 0
        %1836 = vmatpush1.bf16.msra.mxu0 0
        %1837 = vmatprep.subr.bf16.mxu0 0
        %1838 = vmatpush1.bf16.msra.mxu0 0
        %1839 = vmatprep.mubr.bf16.mxu0 0
        %1840 = vmatmul.mubr.bf16.gmra.mrb[0].mxu0 %v1805
        %v1841 = vpop.f32.mrb[0].mxu0
        %v1842 = vadd.f32 0.0, %v1841
        %v1843 = vpop.f32.mrb[0].mxu0
        %v1844 = vpop.f32.mrb[0].mxu0
        %v1845 = vpop.f32.mrb[0].mxu0
        %1846 = vdwg.mxu0
        %v1848 = vsel %vm712, %v1801, 0
        %1850 = vmatprep.subr.bf16.mxu0 0
        %1851 = vmatpush1.bf16.msra.mxu0 %v1205
        %1852 = vmatprep.subr.bf16.mxu0 0
        %1853 = vmatpush1.bf16.msra.mxu0 0
        %1854 = vmatprep.subr.bf16.mxu0 0
        %1855 = vmatpush1.bf16.msra.mxu0 0
        %1856 = vmatprep.subr.bf16.mxu0 0
        %1857 = vmatpush1.bf16.msra.mxu0 0
        %1858 = vmatprep.subr.bf16.mxu0 0
        %1859 = vmatpush1.bf16.msra.mxu0 0
        %1860 = vmatprep.subr.bf16.mxu0 0
        %1861 = vmatpush1.bf16.msra.mxu0 0
        %1862 = vmatprep.subr.bf16.mxu0 0
        %1863 = vmatpush1.bf16.msra.mxu0 0
        %1864 = vmatprep.subr.bf16.mxu0 0
        %1865 = vmatpush1.bf16.msra.mxu0 0
        %1866 = vmatprep.subr.bf16.mxu0 0
        %1867 = vmatpush1.bf16.msra.mxu0 0
        %1868 = vmatprep.subr.bf16.mxu0 0
        %1869 = vmatpush1.bf16.msra.mxu0 0
        %1870 = vmatprep.subr.bf16.mxu0 0
        %1871 = vmatpush1.bf16.msra.mxu0 0
        %1872 = vmatprep.subr.bf16.mxu0 0
        %1873 = vmatpush1.bf16.msra.mxu0 0
        %1874 = vmatprep.subr.bf16.mxu0 0
        %1875 = vmatpush1.bf16.msra.mxu0 0
        %1876 = vmatprep.subr.bf16.mxu0 0
        %1877 = vmatpush1.bf16.msra.mxu0 0
        %1878 = vmatprep.subr.bf16.mxu0 0
        %1879 = vmatpush1.bf16.msra.mxu0 0
        %1880 = vmatprep.subr.bf16.mxu0 0
        %1881 = vmatpush1.bf16.msra.mxu0 0
        %1882 = vmatprep.mubr.bf16.mxu0 0
        %1883 = vmatmul.mubr.bf16.gmra.mrb[0].mxu0 %v1848
        %v1884 = vpop.f32.mrb[0].mxu0
        %v1885 = vadd.f32 0.0, %v1884
        %v1886 = vpop.f32.mrb[0].mxu0
        %v1887 = vpop.f32.mrb[0].mxu0
        %v1888 = vpop.f32.mrb[0].mxu0
        %1889 = vdwg.mxu0
        %v1891 = vsel %vm712, %v1802, 0
        %1893 = vmatprep.subr.bf16.mxu0 0
        %1894 = vmatpush1.bf16.msra.mxu0 %v1251
        %1895 = vmatprep.subr.bf16.mxu0 0
        %1896 = vmatpush1.bf16.msra.mxu0 0
        %1897 = vmatprep.subr.bf16.mxu0 0
        %1898 = vmatpush1.bf16.msra.mxu0 0
        %1899 = vmatprep.subr.bf16.mxu0 0
        %1900 = vmatpush1.bf16.msra.mxu0 0
        %1901 = vmatprep.subr.bf16.mxu0 0
        %1902 = vmatpush1.bf16.msra.mxu0 0
        %1903 = vmatprep.subr.bf16.mxu0 0
        %1904 = vmatpush1.bf16.msra.mxu0 0
        %1905 = vmatprep.subr.bf16.mxu0 0
        %1906 = vmatpush1.bf16.msra.mxu0 0
        %1907 = vmatprep.subr.bf16.mxu0 0
        %1908 = vmatpush1.bf16.msra.mxu0 0
        %1909 = vmatprep.subr.bf16.mxu0 0
        %1910 = vmatpush1.bf16.msra.mxu0 0
        %1911 = vmatprep.subr.bf16.mxu0 0
        %1912 = vmatpush1.bf16.msra.mxu0 0
        %1913 = vmatprep.subr.bf16.mxu0 0
        %1914 = vmatpush1.bf16.msra.mxu0 0
        %1915 = vmatprep.subr.bf16.mxu0 0
        %1916 = vmatpush1.bf16.msra.mxu0 0
        %1917 = vmatprep.subr.bf16.mxu0 0
        %1918 = vmatpush1.bf16.msra.mxu0 0
        %1919 = vmatprep.subr.bf16.mxu0 0
        %1920 = vmatpush1.bf16.msra.mxu0 0
        %1921 = vmatprep.subr.bf16.mxu0 0
        %1922 = vmatpush1.bf16.msra.mxu0 0
        %1923 = vmatprep.subr.bf16.mxu0 0
        %1924 = vmatpush1.bf16.msra.mxu0 0
        %1925 = vmatprep.mubr.bf16.mxu0 0
        %1926 = vmatmul.mubr.bf16.gmra.mrb[0].mxu0 %v1891
        %v1927 = vpop.f32.mrb[0].mxu0
        %v1928 = vadd.f32 0.0, %v1927
        %v1929 = vpop.f32.mrb[0].mxu0
        %v1930 = vpop.f32.mrb[0].mxu0
        %v1931 = vpop.f32.mrb[0].mxu0
        %1932 = vdwg.mxu0
        %v1934 = vsel %vm712, %v1803, 0
        %1936 = vmatprep.subr.bf16.mxu0 0
        %1937 = vmatpush1.bf16.msra.mxu0 %v1297
        %1938 = vmatprep.subr.bf16.mxu0 0
        %1939 = vmatpush1.bf16.msra.mxu0 0
        %1940 = vmatprep.subr.bf16.mxu0 0
        %1941 = vmatpush1.bf16.msra.mxu0 0
        %1942 = vmatprep.subr.bf16.mxu0 0
        %1943 = vmatpush1.bf16.msra.mxu0 0
        %1944 = vmatprep.subr.bf16.mxu0 0
        %1945 = vmatpush1.bf16.msra.mxu0 0
        %1946 = vmatprep.subr.bf16.mxu0 0
        %1947 = vmatpush1.bf16.msra.mxu0 0
        %1948 = vmatprep.subr.bf16.mxu0 0
        %1949 = vmatpush1.bf16.msra.mxu0 0
        %1950 = vmatprep.subr.bf16.mxu0 0
        %1951 = vmatpush1.bf16.msra.mxu0 0
        %1952 = vmatprep.subr.bf16.mxu0 0
        %1953 = vmatpush1.bf16.msra.mxu0 0
        %1954 = vmatprep.subr.bf16.mxu0 0
        %1955 = vmatpush1.bf16.msra.mxu0 0
        %1956 = vmatprep.subr.bf16.mxu0 0
        %1957 = vmatpush1.bf16.msra.mxu0 0
        %1958 = vmatprep.subr.bf16.mxu0 0
        %1959 = vmatpush1.bf16.msra.mxu0 0
        %1960 = vmatprep.subr.bf16.mxu0 0
        %1961 = vmatpush1.bf16.msra.mxu0 0
        %1962 = vmatprep.subr.bf16.mxu0 0
        %1963 = vmatpush1.bf16.msra.mxu0 0
        %1964 = vmatprep.subr.bf16.mxu0 0
        %1965 = vmatpush1.bf16.msra.mxu0 0
        %1966 = vmatprep.subr.bf16.mxu0 0
        %1967 = vmatpush1.bf16.msra.mxu0 0
        %1968 = vmatprep.mubr.bf16.mxu0 0
        %1969 = vmatmul.mubr.bf16.gmra.mrb[0].mxu0 %v1934
        %v1970 = vpop.f32.mrb[0].mxu0
        %v1971 = vadd.f32 0.0, %v1970
        %v1972 = vpop.f32.mrb[0].mxu0
        %v1973 = vpop.f32.mrb[0].mxu0
        %v1974 = vpop.f32.mrb[0].mxu0
        %1975 = vdwg.mxu0
        %v1976 = vsel %vm583, %v1842, 0.0
        %v1977 = vsel %vm583, %v1885, 0.0
        %v1978 = vadd.f32 %v1976, %v1977
        %v1979 = vsel %vm583, %v1928, 0.0
        %v1980 = vadd.f32 %v1978, %v1979
        %v1981 = vsel %vm583, %v1971, 0.0
        %v1982 = vadd.f32 %v1980, %v1981
        %v1983 = vlaneseq
        %v1984 = vshrl.u32 %v1983, 7
        %v1985 = vsub.s32 2, %v1984
        %v1986 = vrot.slane %v582, %v1985
        %v1987 = vadd.f32 %v1345, %v1986
        %v1988 = vadd.f32 %v1982, %v1986
        %v1989 = vadd.f32 %v1987, %v580
        %v1990 = vadd.f32 %v1988, %v581
        %v1991 = vpack.c.bf16 %v1990, %v1989
        %v1992 = vld [vmem:[%s503] sm:$0xf]
        %v1993 = vld [vmem:[%s503 + $0x4] sm:$0xf]
        %v1994 = vld [vmem:[%s503 + $0x8] sm:$0xf]
        %v1995 = vld [vmem:[%s503 + $0xc] sm:$0xf]
        %v1996 = vld [vmem:[%s476] sm:$0x1]
        %v1998 = vlaneseq
        %v1999 = vshrl.u32 %v1998, 7
        %v2000 = vsub.s32 0, %v1999
        %v2001 = vrot.slane %v1996, %v2000
        %v2007 = vunpack.c.l.b16 %v1992
        %v2008 = vunpack.c.l.b16 %v1993
        %v2009 = vunpack.c.l.b16 %v1994
        %v2010 = vunpack.c.l.b16 %v1995
        %v2011 = vpack.c.b16 %v2008, %v2007
        %v2012 = vpack.c.b16 %v2010, %v2009
        %v2016 = vsel %vm583, %v1991, 0
        %2018 = vmatprep.subr.bf16.mxu0 0
        %2019 = vmatpush1.bf16.msra.mxu0 %v2011
        %2020 = vmatprep.subr.bf16.mxu0 0
        %2021 = vmatpush1.bf16.msra.mxu0 %v2012
        %2022 = vmatprep.subr.bf16.mxu0 0
        %2023 = vmatpush1.bf16.msra.mxu0 0
        %2024 = vmatprep.subr.bf16.mxu0 0
        %2025 = vmatpush1.bf16.msra.mxu0 0
        %2026 = vmatprep.subr.bf16.mxu0 0
        %2027 = vmatpush1.bf16.msra.mxu0 0
        %2028 = vmatprep.subr.bf16.mxu0 0
        %2029 = vmatpush1.bf16.msra.mxu0 0
        %2030 = vmatprep.subr.bf16.mxu0 0
        %2031 = vmatpush1.bf16.msra.mxu0 0
        %2032 = vmatprep.subr.bf16.mxu0 0
        %2033 = vmatpush1.bf16.msra.mxu0 0
        %2034 = vmatprep.subr.bf16.mxu0 0
        %2035 = vmatpush1.bf16.msra.mxu0 0
        %2036 = vmatprep.subr.bf16.mxu0 0
        %2037 = vmatpush1.bf16.msra.mxu0 0
        %2038 = vmatprep.subr.bf16.mxu0 0
        %2039 = vmatpush1.bf16.msra.mxu0 0
        %2040 = vmatprep.subr.bf16.mxu0 0
        %2041 = vmatpush1.bf16.msra.mxu0 0
        %2042 = vmatprep.subr.bf16.mxu0 0
        %2043 = vmatpush1.bf16.msra.mxu0 0
        %2044 = vmatprep.subr.bf16.mxu0 0
        %2045 = vmatpush1.bf16.msra.mxu0 0
        %2046 = vmatprep.subr.bf16.mxu0 0
        %2047 = vmatpush1.bf16.msra.mxu0 0
        %2048 = vmatprep.subr.bf16.mxu0 0
        %2049 = vmatpush1.bf16.msra.mxu0 0
        %2050 = vmatprep.mubr.bf16.mxu0 0
        %2051 = vmatmul.mubr.bf16.gmra.mrb[0].mxu0 %v2016
        %v2052 = vpop.f32.mrb[0].mxu0
        %v2053 = vadd.f32 %v2001, %v2052
        %v2054 = vpop.f32.mrb[0].mxu0
        %v2055 = vpop.f32.mrb[0].mxu0
        %v2056 = vadd.f32 %v2001, %v2055
        %v2057 = vpop.f32.mrb[0].mxu0
        %2058 = vdwg.mxu0
        %v2059 = vmul.f32 %v2053, 0.5
        %v2060 = vmul.f32 %v2056, 0.5
        %v2061 = vmul.f32 %v2053, 0.70710677
        %v2062 = vmul.f32 %v2056, 0.70710677
        %vm2063 = vcmp.ge.f32.partialorder %v2061, 0.0
        %vm2064 = vcmp.ge.f32.partialorder %v2062, 0.0
        %v2065 = vsel %vm2063, 1.0, -1.0
        %v2066 = vsel %vm2064, 1.0, -1.0
        %v2067 = vand.u32 2147483647, %v2061
        %v2068 = vand.u32 2147483647, %v2062
        %v2069 = vmul.f32 %v2067, 0.3275911
        %v2070 = vmul.f32 %v2068, 0.3275911
        %v2071 = vadd.f32 %v2069, 1.0
        %v2072 = vadd.f32 %v2070, 1.0
        %v2073 = vrcp.pop %v2071
        %v2074 = vmul.f32 1.0, %v2073
        %v2075 = vrcp.pop %v2072
        %v2076 = vmul.f32 1.0, %v2075
        %v2077 = vmul.f32 %v2074, 1.0614054
        %v2078 = vmul.f32 %v2076, 1.0614054
        %v2079 = vadd.f32 %v2077, -1.4531521
        %v2080 = vadd.f32 %v2078, -1.4531521
        %v2081 = vmul.f32 %v2079, %v2074
        %v2082 = vmul.f32 %v2080, %v2076
        %v2083 = vadd.f32 %v2081, 1.4214138
        %v2084 = vadd.f32 %v2082, 1.4214138
        %v2085 = vmul.f32 %v2083, %v2074
        %v2086 = vmul.f32 %v2084, %v2076
        %v2087 = vadd.f32 %v2085, -0.28449672
        %v2088 = vadd.f32 %v2086, -0.28449672
        %v2089 = vmul.f32 %v2087, %v2074
        %v2090 = vmul.f32 %v2088, %v2076
        %v2091 = vadd.f32 %v2089, 0.2548296
        %v2092 = vadd.f32 %v2090, 0.2548296
        %v2093 = vmul.f32 %v2091, %v2074
        %v2094 = vmul.f32 %v2092, %v2076
        %v2095 = vsub.f32 0.0, %v2067
        %v2096 = vsub.f32 0.0, %v2068
        %v2097 = vmul.f32 %v2095, %v2067
        %v2098 = vmul.f32 %v2096, %v2068
        %v2099 = vmul.f32 %v2097, 1.442695
        %v2100 = vpow.pop %v2099
        %v2101 = vmul.f32 %v2098, 1.442695
        %v2102 = vpow.pop %v2101
        %v2103 = vmul.f32 %v2093, %v2100
        %v2104 = vmul.f32 %v2094, %v2102
        %v2105 = vsub.f32 1.0, %v2103
        %v2106 = vsub.f32 1.0, %v2104
        %v2107 = vmul.f32 %v2065, %v2105
        %v2108 = vmul.f32 %v2066, %v2106
        %v2109 = vadd.f32 %v2107, 1.0
        %v2110 = vadd.f32 %v2108, 1.0
        %v2111 = vmul.f32 %v2059, %v2109
        %v2112 = vmul.f32 %v2060, %v2110
        %v2113 = vpack.c.bf16 %v2112, %v2111
        %v2114 = vld [vmem:[%s512] sm:$0xf]
        %v2115 = vld [vmem:[%s512 + $0x4] sm:$0xf]
        %v2116 = vld [vmem:[%s512 + $0x8] sm:$0xf]
        %v2117 = vld [vmem:[%s512 + $0xc] sm:$0xf]
        %v2118 = vld [vmem:[%s512 + $0x10] sm:$0xf]
        %v2119 = vld [vmem:[%s512 + $0x14] sm:$0xf]
        %v2120 = vld [vmem:[%s512 + $0x18] sm:$0xf]
        %v2121 = vld [vmem:[%s512 + $0x1c] sm:$0xf]
        %v2122 = vld [vmem:[%s512 + $0x20] sm:$0xf]
        %v2123 = vld [vmem:[%s512 + $0x24] sm:$0xf]
        %v2124 = vld [vmem:[%s512 + $0x28] sm:$0xf]
        %v2125 = vld [vmem:[%s512 + $0x2c] sm:$0xf]
        %v2126 = vld [vmem:[%s512 + $0x30] sm:$0xf]
        %v2127 = vld [vmem:[%s512 + $0x34] sm:$0xf]
        %v2128 = vld [vmem:[%s512 + $0x38] sm:$0xf]
        %v2129 = vld [vmem:[%s512 + $0x3c] sm:$0xf]
        %v2130 = vlaneseq
        %v2131 = vshrl.u32 %v2130, 7
        %v2132 = vsub.s32 3, %v2131
        %v2133 = vrot.slane %v582, %v2132
        %v2150 = vunpack.c.l.b16 %v2114
        %v2151 = vunpack.c.l.b16 %v2115
        %v2152 = vunpack.c.l.b16 %v2116
        %v2153 = vunpack.c.l.b16 %v2117
        %v2154 = vunpack.c.l.b16 %v2118
        %v2155 = vunpack.c.l.b16 %v2119
        %v2156 = vunpack.c.l.b16 %v2120
        %v2157 = vunpack.c.l.b16 %v2121
        %v2158 = vunpack.c.l.b16 %v2122
        %v2159 = vunpack.c.l.b16 %v2123
        %v2160 = vunpack.c.l.b16 %v2124
        %v2161 = vunpack.c.l.b16 %v2125
        %v2162 = vunpack.c.l.b16 %v2126
        %v2163 = vunpack.c.l.b16 %v2127
        %v2164 = vunpack.c.l.b16 %v2128
        %v2165 = vunpack.c.l.b16 %v2129
        %v2166 = vpack.c.b16 %v2151, %v2150
        %v2167 = vpack.c.b16 %v2153, %v2152
        %v2168 = vpack.c.b16 %v2155, %v2154
        %v2169 = vpack.c.b16 %v2157, %v2156
        %v2170 = vpack.c.b16 %v2159, %v2158
        %v2171 = vpack.c.b16 %v2161, %v2160
        %v2172 = vpack.c.b16 %v2163, %v2162
        %v2173 = vpack.c.b16 %v2165, %v2164
        %2182 = vmatprep.subr.bf16.mxu0 0
        %2183 = vmatpush1.bf16.msra.mxu0 %v2166
        %2184 = vmatprep.subr.bf16.mxu0 0
        %2185 = vmatpush1.bf16.msra.mxu0 %v2167
        %2186 = vmatprep.subr.bf16.mxu0 0
        %2187 = vmatpush1.bf16.msra.mxu0 %v2168
        %2188 = vmatprep.subr.bf16.mxu0 0
        %2189 = vmatpush1.bf16.msra.mxu0 %v2169
        %2190 = vmatprep.subr.bf16.mxu0 0
        %2191 = vmatpush1.bf16.msra.mxu0 %v2170
        %2192 = vmatprep.subr.bf16.mxu0 0
        %2193 = vmatpush1.bf16.msra.mxu0 %v2171
        %2194 = vmatprep.subr.bf16.mxu0 0
        %2195 = vmatpush1.bf16.msra.mxu0 %v2172
        %2196 = vmatprep.subr.bf16.mxu0 0
        %2197 = vmatpush1.bf16.msra.mxu0 %v2173
        %2198 = vmatprep.subr.bf16.mxu0 0
        %2199 = vmatpush1.bf16.msra.mxu0 0
        %2200 = vmatprep.subr.bf16.mxu0 0
        %2201 = vmatpush1.bf16.msra.mxu0 0
        %2202 = vmatprep.subr.bf16.mxu0 0
        %2203 = vmatpush1.bf16.msra.mxu0 0
        %2204 = vmatprep.subr.bf16.mxu0 0
        %2205 = vmatpush1.bf16.msra.mxu0 0
        %2206 = vmatprep.subr.bf16.mxu0 0
        %2207 = vmatpush1.bf16.msra.mxu0 0
        %2208 = vmatprep.subr.bf16.mxu0 0
        %2209 = vmatpush1.bf16.msra.mxu0 0
        %2210 = vmatprep.subr.bf16.mxu0 0
        %2211 = vmatpush1.bf16.msra.mxu0 0
        %2212 = vmatprep.subr.bf16.mxu0 0
        %2213 = vmatpush1.bf16.msra.mxu0 0
        %2214 = vmatprep.mubr.bf16.mxu0 0
        %2215 = vmatmul.mubr.bf16.gmra.mrb[0].mxu0 %v2113
        %v2216 = vpop.f32.mrb[0].mxu0
        %v2217 = vadd.f32 %v2133, %v2216
        %v2218 = vpop.f32.mrb[0].mxu0
        %v2219 = vpop.f32.mrb[0].mxu0
        %v2220 = vadd.f32 %v2133, %v2219
        %v2221 = vpop.f32.mrb[0].mxu0
        %2222 = vdwg.mxu0
        %v2223 = vadd.f32 %v2217, %v1989
        %v2224 = vadd.f32 %v2220, %v1990
        %2225 = vst.msk [vmem:[#allocation16] sm:$0xff] %vm583, %v2223
        %2226 = vst.msk [vmem:[#allocation16 + $0x8] sm:$0xff] %vm583, %v2224
        // Predicated region
        $region89: #{tpu_custom_call.1} parent=51 // pred_check
          %p2227 = pneg %p271
        $region90: #{tpu_custom_call.1} parent=51 // pred_check_branch
          %2229 = sbr.rel (%p2227) target = $region92
        $region91: #{tpu_custom_call.1} parent=51 // pred_region
          %s2230 = smul.u32 2, %s37
          %s2232 = ssub.s32 256, 256
          %2233 = vsyncadd [#allocation4], %s2232
          %s2234 = smul.addr %s2230, 128
          %s2235 = scalar_lea.hbm %s8, %s2234
          %s2236 = sshll.u32 [#allocation16], 4
          %s2237 = int_to_ptr.vmem [resolvable:$true] %s2236
          %2242 = dma.vmem_to_hbm [thread:$0]  %s2237, 256, %s2235, [#allocation4], 128, 128, 8
        $region92: #{tpu_custom_call.1} parent=51 // pred_fallthru
          _
        // Predicated region
        $region93: #{tpu_custom_call.1} parent=51 // pred_check
          %p2243 = pneg %p271
        $region94: #{tpu_custom_call.1} parent=51 // pred_check_branch
          %2245 = sbr.rel (%p2243) target = $region96
        $region95: #{tpu_custom_call.1} parent=51 // pred_region
          %2246 = dma.done [#allocation4], 256
        $region96: #{tpu_custom_call.1} parent=51 // pred_fallthru
          _
      $region52: #{tpu_custom_call.1} parent=5 // pred_fallthru
        _
      %p2247 = scmp.le.s32.totalorder 2, %s28
      // Predicated region
      $region97: #{tpu_custom_call.1} parent=5 // pred_check
        %p2248 = pneg %p2247
      $region98: #{tpu_custom_call.1} parent=5 // pred_check_branch
        %2250 = sbr.rel (%p2248) target = $region100
      $region99: #{tpu_custom_call.1} parent=5 // pred_region
        %s2251 = ssub.s32 %s28, 2
      $region100: #{tpu_custom_call.1} parent=5 // pred_fallthru
        _
    $region6: #{tpu_custom_call.1} parent=1 // loop_footer
      %s32 = sadd.s32 1, %s28
    $region7: #{tpu_custom_call.1} parent=1 // loop_footer_branch
      %27 = sbr.rel target = $region3
    $region8: #{tpu_custom_call.1} parent=1 // loop_exit
      _
    %2252 = vsyncpa [#allocation3], 1
    %s2253 = scalar_lea.sflag [#allocation3], 1
    %2254 = vsyncpa %s2253, 1
    %2255 = vsyncpa [#allocation6], 1
    %s2256 = scalar_lea.sflag [#allocation6], 1
    %2257 = vsyncpa %s2256, 1
    %2258 = vsyncpa [#allocation9], 1
    %s2259 = scalar_lea.sflag [#allocation9], 1
    %2260 = vsyncpa %s2259, 1
    %2261 = vsyncpa [#allocation12], 1
    %s2262 = scalar_lea.sflag [#allocation12], 1
    %2263 = vsyncpa %s2262, 1
    %2264 = vsyncpa [#allocation15], 1
    %s2265 = scalar_lea.sflag [#allocation15], 1
    %2266 = vsyncpa %s2265, 1
    %2267 = vsyncpa [#allocation4], 1
    %s2268 = scalar_lea.sflag [#allocation4], 1
    %2269 = vsyncpa %s2268, 1

</llo_original>
